<compile_context>
chip_gen: v7x
topology: tpu7x:2x2x1
jax: 0.10.0
libtpu: 0.0.40
codegen_flags: <defaults>
</compile_context>

<pallas_src>
import functools
import math

import jax
import jax.numpy as jnp
from jax.experimental import pallas as pl
from jax.experimental.pallas import tpu as pltpu


# ----------------------------- Pallas kernels ------------------------------

def _matmul_stats_kernel(p_ref, w_ref, conv_ref, stats_ref):
    """Pass 1: conv-as-matmul tile + per-tile BN partial statistics.

    p_ref:     (tm, Kp)   bf16 im2col patch tile
    w_ref:     (Kp, Cp)   bf16 weights (resident across the grid)
    conv_ref:  (tm, Cp)   f32 pre-BN conv output tile
    stats_ref: (1, 2, Cp) f32 per-tile [sum, sum_of_squares] over rows
    """
    y = jnp.dot(p_ref[...], w_ref[...], preferred_element_type=jnp.float32)
    conv_ref[...] = y
    s = jnp.sum(y, axis=0, keepdims=True)
    sq = jnp.sum(y * y, axis=0, keepdims=True)
    stats_ref[0] = jnp.concatenate([s, sq], axis=0)


def _bn_relu_kernel(x_ref, scale_ref, shift_ref, o_ref):
    """Pass 2: y = relu(x*scale + shift); BN affine folded into scale/shift."""
    y = x_ref[...] * scale_ref[...] + shift_ref[...]
    o_ref[...] = jnp.maximum(y, 0.0).astype(o_ref.dtype)


def _bn_relu_pool_kernel(x_ref, scale_ref, shift_ref, o_ref, p_ref, *, width):
    """Pass 2 with a fused 2x2 max pool.

    Tile rows are (n, h, w) row-major; tm is a multiple of 2*width and tiles
    start at even image rows, so every tile covers whole 2x2 windows.
    """
    sc = scale_ref[...]
    sh = shift_ref[...]

    y = jnp.maximum(x_ref[...] * sc + sh, 0.0)
    o_ref[...] = y.astype(o_ref.dtype)

    tm, cp = x_ref.shape
    wo = width // 2
    # (a) pool along w: even/odd flat rows are exactly even/odd w (width even).
    ye = jnp.maximum(x_ref[pl.ds(0, tm // 2, stride=2), :] * sc + sh, 0.0)
    yo = jnp.maximum(x_ref[pl.ds(1, tm // 2, stride=2), :] * sc + sh, 0.0)
    m1 = jnp.maximum(ye, yo)                          # rows: (n, h, wo)
    # (b) pool along h: consecutive groups of `wo` rows alternate h parity.
    m2 = m1.reshape(tm // (2 * width), 2, wo, cp)     # leading-dim split only
    pooled = jnp.max(m2, axis=1)                      # (tm//(2*width), wo, cp)
    p_ref[...] = pooled.reshape(tm // 4, cp).astype(p_ref.dtype)


# ------------------------------ small helpers ------------------------------

def _round_up(v, m):
    return (v + m - 1) // m * m


def _pick_tile_m(m_rows, row_unit, target, kp, cp):
    # Largest multiple of row_unit that divides m_rows, is <= target, and whose
    # double-buffered per-step footprint stays within ~24 MiB of VMEM
    # (safe for v7x's 64 MiB per-TC VMEM as well as v5e/v6e's 128 MiB).
    per_row_bytes = 2 * kp * 2 + 5 * cp * 4
    target = max(row_unit, min(target, (24 * 1024 * 1024) // per_row_bytes))
    n_units = m_rows // row_unit
    per = max(1, min(n_units, target // row_unit))
    while n_units % per:
        per -= 1
    return per * row_unit


def _vmem_limit_bytes(tm, kp, cp):
    est = 2 * tm * kp * 2 + 2 * kp * cp * 2 + 5 * tm * cp * 4 + (1 << 20)
    return int(min(64 * 1024 * 1024, max(16 * 1024 * 1024, 2 * est)))


def _im2col_3x3(x, k_pad):
    # (N, H, W, C) -> (N*H*W, k_pad) same-padding 3x3 patches, tap-major cols.
    # TODO(synk): replace with an in-kernel halo DMA (memory_space=pl.ANY +
    # pltpu.make_async_copy) to avoid materializing the 9x patch matrix in HBM.
    n, h, w, c = x.shape
    xp = jnp.pad(x, ((0, 0), (1, 1), (1, 1), (0, 0)))
    cols = [xp[:, dy:dy + h, dx:dx + w, :] for dy in range(3) for dx in range(3)]
    patches = jnp.concatenate(cols, axis=-1).reshape(n * h * w, 9 * c)
    if k_pad > 9 * c:
        patches = jnp.pad(patches, ((0, 0), (0, k_pad - 9 * c)))
    return patches


def _prep_weights(w, k_pad, c_pad):
    # (Cout, Cin, 3, 3) OIHW -> (k_pad, c_pad) bf16, tap-major rows, zero pad.
    cout, cin = w.shape[0], w.shape[1]
    w2d = jnp.transpose(w, (2, 3, 1, 0)).reshape(9 * cin, cout)
    w2d = jnp.pad(w2d, ((0, k_pad - 9 * cin), (0, c_pad - cout)))
    return w2d.astype(jnp.bfloat16)


# ------------------------- conv + BN + ReLU (+ pool) ------------------------

def conv_bn_relu(x_nhwc, w, gamma, beta, *, tm_target=1024,
                 out_dtype=jnp.float32, pool=False):
    """3x3 same conv -> BatchNorm(training stats) -> ReLU  [-> fused 2x2 pool].

    x_nhwc: (N, H, W, Cin); w: (Cout, Cin, 3, 3) PyTorch OIHW. Returns NHWC.
    The conv bias is intentionally absent: training-mode BN mean subtraction
    absorbs any per-channel constant exactly.
    """
    n, h, wdt, cin = x_nhwc.shape
    cout = w.shape[0]
    assert h % 2 == 0 and wdt % 2 == 0, "encoder_block needs even H and W"
    m = n * h * wdt
    k = 9 * cin
    kp = _round_up(k, 16)            # bf16 sublane-aligned contraction dim
    cp = _round_up(cout, 128)        # lane-dense channel dim (unmasked stores)

    row_unit = math.lcm(2 * wdt, 8)  # whole 2x2-window row pairs per tile
    assert m % row_unit == 0
    tm = _pick_tile_m(m, row_unit, tm_target, kp, cp)
    grid = (m // tm,)
    vmem_limit = _vmem_limit_bytes(tm, kp, cp)

    patches = _im2col_3x3(x_nhwc.astype(jnp.bfloat16), kp)     # (M, Kp) bf16
    w2d = _prep_weights(w, kp, cp)                              # (Kp, Cp) bf16

    # ---- pass 1: tiled matmul + per-tile partial channel statistics ----
    conv_out, stats_p = pl.pallas_call(
        _matmul_stats_kernel,
        out_shape=(jax.ShapeDtypeStruct((m, cp), jnp.float32),
                   jax.ShapeDtypeStruct((grid[0], 2, cp), jnp.float32)),
        grid=grid,
        in_specs=[pl.BlockSpec((tm, kp), lambda i: (i, 0)),
                  pl.BlockSpec((kp, cp), lambda i: (0, 0))],
        out_specs=(pl.BlockSpec((tm, cp), lambda i: (i, 0)),
                   pl.BlockSpec((1, 2, cp), lambda i: (i, 0, 0))),
        compiler_params=pltpu.CompilerParams(
            dimension_semantics=("parallel",),
            vmem_limit_bytes=vmem_limit),
        cost_estimate=pl.CostEstimate(
            flops=2 * m * kp * cp,
            transcendentals=0,
            bytes_accessed=m * kp * 2 + kp * cp * 2 + (m + 2 * grid[0]) * cp * 4),
    )(patches, w2d)

    # ---- fold training-mode BN into per-channel scale/shift (tiny glue) ----
    sums = jnp.sum(stats_p, axis=0)                    # (2, Cp)
    mean = sums[0] / m
    var = jnp.maximum(sums[1] / m - mean * mean, 0.0)  # one-pass E[x^2]-E[x]^2
    inv = jax.lax.rsqrt(var + 1e-5)
    gamma_p = jnp.pad(gamma.astype(jnp.float32), (0, cp - cout))
    beta_p = jnp.pad(beta.astype(jnp.float32), (0, cp - cout))
    scale = (gamma_p * inv).reshape(1, cp)
    shift = (beta_p - mean * gamma_p * inv).reshape(1, cp)

    # ---- pass 2: affine + ReLU (+ fused 2x2 max pool), fully parallel ----
    common = dict(
        grid=grid,
        in_specs=[pl.BlockSpec((tm, cp), lambda i: (i, 0)),
                  pl.BlockSpec((1, cp), lambda i: (0, 0)),
                  pl.BlockSpec((1, cp), lambda i: (0, 0))],
        compiler_params=pltpu.CompilerParams(
            dimension_semantics=("parallel",),
            vmem_limit_bytes=vmem_limit),
    )
    if pool:
        y, p = pl.pallas_call(
            functools.partial(_bn_relu_pool_kernel, width=wdt),
            out_shape=(jax.ShapeDtypeStruct((m, cp), out_dtype),
                       jax.ShapeDtypeStruct((m // 4, cp), out_dtype)),
            out_specs=(pl.BlockSpec((tm, cp), lambda i: (i, 0)),
                       pl.BlockSpec((tm // 4, cp), lambda i: (i, 0))),
            **common,
        )(conv_out, scale, shift)
        y = y.reshape(n, h, wdt, cp)[..., :cout]
        p = p.reshape(n, h // 2, wdt // 2, cp)[..., :cout]
        return y, p

    y = pl.pallas_call(
        _bn_relu_kernel,
        out_shape=jax.ShapeDtypeStruct((m, cp), out_dtype),
        out_specs=pl.BlockSpec((tm, cp), lambda i: (i, 0)),
        **common,
    )(conv_out, scale, shift)
    return y.reshape(n, h, wdt, cp)[..., :cout]


def encoder_block_forward(x_nchw, params, *, tm_target=1024):
    """Matches PyTorch encoder_block.forward: returns (x, p), both NCHW."""
    x = jnp.transpose(x_nchw, (0, 2, 3, 1))                       # NCHW -> NHWC
    # conv biases b1/b2 are absorbed exactly by training-mode BN; not passed.
    x1 = conv_bn_relu(x, params["w1"], params["g1"], params["bt1"],
                      tm_target=tm_target, out_dtype=jnp.bfloat16)
    x2, p2 = conv_bn_relu(x1, params["w2"], params["g2"], params["bt2"],
                          tm_target=tm_target, out_dtype=jnp.float32, pool=True)
    return jnp.transpose(x2, (0, 3, 1, 2)), jnp.transpose(p2, (0, 3, 1, 2))


# ------------------------- pure-JAX reference checks ------------------------

def _conv_ref(x, w, b, cast_bf16):
    if cast_bf16:
        x = x.astype(jnp.bfloat16)
        w = w.astype(jnp.bfloat16)
    y = jax.lax.conv_general_dilated(
        x, w, window_strides=(1, 1), padding=((1, 1), (1, 1)),
        dimension_numbers=("NCHW", "OIHW", "NCHW"),
        preferred_element_type=jnp.float32)
    return y + b.reshape(1, -1, 1, 1)


def _bn_relu_ref(x, g, bt):
    mean = jnp.mean(x, axis=(0, 2, 3), keepdims=True)
    var = jnp.mean(jnp.square(x - mean), axis=(0, 2, 3), keepdims=True)
    y = (x - mean) * jax.lax.rsqrt(var + 1e-5)
    return jnp.maximum(y * g.reshape(1, -1, 1, 1) + bt.reshape(1, -1, 1, 1), 0.0)


def _ref_forward(x_nchw, params, *, bf16_inputs):
    # bf16_inputs=True mirrors the kernel's dtype policy (bf16 MXU operands,
    # f32 accumulation, f32 BN/ReLU, bf16 inter-layer activation).
    x = _bn_relu_ref(_conv_ref(x_nchw, params["w1"], params["b1"], bf16_inputs),
                     params["g1"], params["bt1"])
    if bf16_inputs:
        x = x.astype(jnp.bfloat16).astype(jnp.float32)
    x = _bn_relu_ref(_conv_ref(x, params["w2"], params["b2"], bf16_inputs),
                     params["g2"], params["bt2"])
    n, c, h, w = x.shape
    p = x.reshape(n, c, h // 2, 2, w // 2, 2).max(axis=(3, 5))
    return x, p


# ---------------------------------- main -----------------------------------

if __name__ == "__main__":
    key = jax.random.PRNGKey(0)
    ks = jax.random.split(key, 9)

    N, in_c, out_c, H, W = 2, 4, 8, 16, 16

    params = {
        "w1": jax.random.normal(ks[0], (out_c, in_c, 3, 3), jnp.float32) * 0.2,
        "b1": jax.random.normal(ks[1], (out_c,), jnp.float32) * 0.1,
        "g1": 1.0 + 0.2 * jax.random.normal(ks[2], (out_c,), jnp.float32),
        "bt1": 0.1 * jax.random.normal(ks[3], (out_c,), jnp.float32),
        "w2": jax.random.normal(ks[4], (out_c, out_c, 3, 3), jnp.float32) * 0.2,
        "b2": jax.random.normal(ks[5], (out_c,), jnp.float32) * 0.1,
        "g2": 1.0 + 0.2 * jax.random.normal(ks[6], (out_c,), jnp.float32),
        "bt2": 0.1 * jax.random.normal(ks[7], (out_c,), jnp.float32),
    }

    x = jax.random.normal(ks[8], (N, in_c, H, W), jnp.float32)

    # tm_target=256 forces a multi-tile grid even at this small size, so the
    # cross-tile BN-statistics path is exercised at runtime.
    fwd = jax.jit(functools.partial(encoder_block_forward, tm_target=256))
    x_out, p_out = fwd(x, params)
    jax.block_until_ready((x_out, p_out))

    assert x_out.shape == (N, out_c, H, W)
    assert p_out.shape == (N, out_c, H // 2, W // 2)

    # Tight check against a reference that mirrors the kernel's bf16-operand /
    # f32-accumulation policy.
    x_rbf, p_rbf = _ref_forward(x, params, bf16_inputs=True)
    assert jnp.allclose(x_out, x_rbf, atol=5e-3, rtol=5e-3)
    assert jnp.allclose(p_out, p_rbf, atol=5e-3, rtol=5e-3)

    # Looser check against the exact f32 PyTorch-semantics reference (the only
    # deviation is bf16 MXU inputs).
    x_r32, p_r32 = _ref_forward(x, params, bf16_inputs=False)
    assert jnp.allclose(x_out, x_r32, atol=3e-2, rtol=3e-2)
    assert jnp.allclose(p_out, p_r32, atol=3e-2, rtol=3e-2)

    print("KERNEL_OK")
</pallas_src>

<mosaic_0001>
module attributes {stable_mosaic.version = 11 : i64} {
  func.func @_matmul_stats_kernel(%arg0: i32, %arg1: memref<256x48xbf16, #tpu.memory_space<vmem>>, %arg2: memref<48x128xbf16, #tpu.memory_space<vmem>>, %arg3: memref<256x128xf32, #tpu.memory_space<vmem>>, %arg4: memref<1x2x128xf32, #tpu.memory_space<vmem>>) attributes {dimension_semantics = [#tpu.dimension_semantics<parallel>], iteration_bounds = array<i64: 2>, scalar_prefetch = 0 : i64, scratch_operands = 0 : i64, tpu.core_type = #tpu.core_type<tc>, window_params = [{transform_indices = @transform_0, window_bounds = array<i64: 256, 48>}, {pipeline_mode = #tpu.pipeline_mode<synchronous>, transform_indices = @transform_1, window_bounds = array<i64: 48, 128>}, {transform_indices = @transform_2, window_bounds = array<i64: 256, 128>}, {transform_indices = @transform_3, window_bounds = array<i64: 1, 2, 128>}]} {
    %c0 = arith.constant 0 : index
    %c0_0 = arith.constant 0 : index
    %0 = vector.load %arg1[%c0, %c0_0] : memref<256x48xbf16, #tpu.memory_space<vmem>>, vector<256x48xbf16>
    %c0_1 = arith.constant 0 : index
    %c0_2 = arith.constant 0 : index
    %1 = vector.load %arg2[%c0_1, %c0_2] : memref<48x128xbf16, #tpu.memory_space<vmem>>, vector<48x128xbf16>
    %cst = arith.constant dense<0.000000e+00> : vector<256x128xf32>
    %2 = tpu.matmul %0, %1, %cst {dimension_numbers = #tpu.dot_dimension_numbers<[1], [0], [0], [1], [0, 0, 1, 1], [], []>} : vector<256x48xbf16>, vector<48x128xbf16>, vector<256x128xf32> -> vector<256x128xf32>
    %c0_3 = arith.constant 0 : index
    %c0_4 = arith.constant 0 : index
    %3 = vector.load %arg3[%c0_3, %c0_4] : memref<256x128xf32, #tpu.memory_space<vmem>>, vector<256x128xf32>
    tpu.vector_store %arg3[%c0_3, %c0_4], %2 {strides = array<i32>} : memref<256x128xf32, #tpu.memory_space<vmem>>, vector<256x128xf32>,
    %cst_5 = arith.constant dense<0.000000e+00> : vector<128xf32>
    %4 = vector.multi_reduction <add>, %2, %cst_5 [0] : vector<256x128xf32> to vector<128xf32>
    %5 = vector.shape_cast %4 : vector<128xf32> to vector<1x128xf32>
    %6 = arith.mulf %2, %2 : vector<256x128xf32>
    %cst_6 = arith.constant dense<0.000000e+00> : vector<128xf32>
    %7 = vector.multi_reduction <add>, %6, %cst_6 [0] : vector<256x128xf32> to vector<128xf32>
    %8 = vector.shape_cast %7 : vector<128xf32> to vector<1x128xf32>
    %9 = tpu.concatenate %5, %8 in 0 : vector<1x128xf32>, vector<1x128xf32> -> vector<2x128xf32>
    %c0_7 = arith.constant 0 : index
    %c0_8 = arith.constant 0 : index
    %c0_9 = arith.constant 0 : index
    %10 = vector.load %arg4[%c0_7, %c0_8, %c0_9] : memref<1x2x128xf32, #tpu.memory_space<vmem>>, vector<1x2x128xf32>
    %11 = vector.shape_cast %10 : vector<1x2x128xf32> to vector<2x128xf32>
    %12 = vector.shape_cast %9 : vector<2x128xf32> to vector<1x2x128xf32>
    tpu.vector_store %arg4[%c0_7, %c0_8, %c0_9], %12 {strides = array<i32>} : memref<1x2x128xf32, #tpu.memory_space<vmem>>, vector<1x2x128xf32>,
    return
  }
  func.func @transform_0(%arg0: i32) -> (i32, i32) {
    %c0_i32 = arith.constant 0 : i32
    %c0_i32_0 = arith.constant 0 : i32
    return %arg0, %c0_i32 : i32, i32
  }
  func.func @transform_1(%arg0: i32) -> (i32, i32) {
    %c0_i32 = arith.constant 0 : i32
    %c0_i32_0 = arith.constant 0 : i32
    %c0_i32_1 = arith.constant 0 : i32
    return %c0_i32, %c0_i32_0 : i32, i32
  }
  func.func @transform_2(%arg0: i32) -> (i32, i32) {
    %c0_i32 = arith.constant 0 : i32
    %c0_i32_0 = arith.constant 0 : i32
    return %arg0, %c0_i32 : i32, i32
  }
  func.func @transform_3(%arg0: i32) -> (i32, i32, i32) {
    %c0_i32 = arith.constant 0 : i32
    %c0_i32_0 = arith.constant 0 : i32
    %c0_i32_1 = arith.constant 0 : i32
    return %arg0, %c0_i32, %c0_i32_0 : i32, i32, i32
  }
}

module attributes {stable_mosaic.version = 11 : i64} {
  func.func @_bn_relu_kernel(%arg0: i32, %arg1: memref<256x128xf32, #tpu.memory_space<vmem>>, %arg2: memref<1x128xf32, #tpu.memory_space<vmem>>, %arg3: memref<1x128xf32, #tpu.memory_space<vmem>>, %arg4: memref<256x128xbf16, #tpu.memory_space<vmem>>) attributes {dimension_semantics = [#tpu.dimension_semantics<parallel>], iteration_bounds = array<i64: 2>, scalar_prefetch = 0 : i64, scratch_operands = 0 : i64, tpu.core_type = #tpu.core_type<tc>, window_params = [{transform_indices = @transform_0, window_bounds = array<i64: 256, 128>}, {pipeline_mode = #tpu.pipeline_mode<synchronous>, transform_indices = @transform_1, window_bounds = array<i64: 1, 128>}, {pipeline_mode = #tpu.pipeline_mode<synchronous>, transform_indices = @transform_2, window_bounds = array<i64: 1, 128>}, {transform_indices = @transform_3, window_bounds = array<i64: 256, 128>}]} {
    %c0 = arith.constant 0 : index
    %c0_0 = arith.constant 0 : index
    %0 = vector.load %arg1[%c0, %c0_0] : memref<256x128xf32, #tpu.memory_space<vmem>>, vector<256x128xf32>
    %c0_1 = arith.constant 0 : index
    %c0_2 = arith.constant 0 : index
    %1 = vector.load %arg2[%c0_1, %c0_2] : memref<1x128xf32, #tpu.memory_space<vmem>>, vector<1x128xf32>
    %2 = vector.broadcast %1 : vector<1x128xf32> to vector<256x128xf32>
    %3 = arith.mulf %0, %2 : vector<256x128xf32>
    %c0_3 = arith.constant 0 : index
    %c0_4 = arith.constant 0 : index
    %4 = vector.load %arg3[%c0_3, %c0_4] : memref<1x128xf32, #tpu.memory_space<vmem>>, vector<1x128xf32>
    %5 = vector.broadcast %4 : vector<1x128xf32> to vector<256x128xf32>
    %6 = arith.addf %3, %5 : vector<256x128xf32>
    %cst = arith.constant 0.000000e+00 : f32
    %7 = vector.broadcast %cst : f32 to vector<256x128xf32>
    %8 = arith.maximumf %6, %7 : vector<256x128xf32>
    %9 = arith.truncf %8 : vector<256x128xf32> to vector<256x128xbf16>
    %c0_5 = arith.constant 0 : index
    %c0_6 = arith.constant 0 : index
    %10 = vector.load %arg4[%c0_5, %c0_6] : memref<256x128xbf16, #tpu.memory_space<vmem>>, vector<256x128xbf16>
    tpu.vector_store %arg4[%c0_5, %c0_6], %9 {strides = array<i32>} : memref<256x128xbf16, #tpu.memory_space<vmem>>, vector<256x128xbf16>,
    return
  }
  func.func @transform_0(%arg0: i32) -> (i32, i32) {
    %c0_i32 = arith.constant 0 : i32
    %c0_i32_0 = arith.constant 0 : i32
    return %arg0, %c0_i32 : i32, i32
  }
  func.func @transform_1(%arg0: i32) -> (i32, i32) {
    %c0_i32 = arith.constant 0 : i32
    %c0_i32_0 = arith.constant 0 : i32
    %c0_i32_1 = arith.constant 0 : i32
    return %c0_i32, %c0_i32_0 : i32, i32
  }
  func.func @transform_2(%arg0: i32) -> (i32, i32) {
    %c0_i32 = arith.constant 0 : i32
    %c0_i32_0 = arith.constant 0 : i32
    %c0_i32_1 = arith.constant 0 : i32
    return %c0_i32, %c0_i32_0 : i32, i32
  }
  func.func @transform_3(%arg0: i32) -> (i32, i32) {
    %c0_i32 = arith.constant 0 : i32
    %c0_i32_0 = arith.constant 0 : i32
    return %arg0, %c0_i32 : i32, i32
  }
}

module attributes {stable_mosaic.version = 11 : i64} {
  func.func @_matmul_stats_kernel(%arg0: i32, %arg1: memref<256x80xbf16, #tpu.memory_space<vmem>>, %arg2: memref<80x128xbf16, #tpu.memory_space<vmem>>, %arg3: memref<256x128xf32, #tpu.memory_space<vmem>>, %arg4: memref<1x2x128xf32, #tpu.memory_space<vmem>>) attributes {dimension_semantics = [#tpu.dimension_semantics<parallel>], iteration_bounds = array<i64: 2>, scalar_prefetch = 0 : i64, scratch_operands = 0 : i64, tpu.core_type = #tpu.core_type<tc>, window_params = [{transform_indices = @transform_0, window_bounds = array<i64: 256, 80>}, {pipeline_mode = #tpu.pipeline_mode<synchronous>, transform_indices = @transform_1, window_bounds = array<i64: 80, 128>}, {transform_indices = @transform_2, window_bounds = array<i64: 256, 128>}, {transform_indices = @transform_3, window_bounds = array<i64: 1, 2, 128>}]} {
    %c0 = arith.constant 0 : index
    %c0_0 = arith.constant 0 : index
    %0 = vector.load %arg1[%c0, %c0_0] : memref<256x80xbf16, #tpu.memory_space<vmem>>, vector<256x80xbf16>
    %c0_1 = arith.constant 0 : index
    %c0_2 = arith.constant 0 : index
    %1 = vector.load %arg2[%c0_1, %c0_2] : memref<80x128xbf16, #tpu.memory_space<vmem>>, vector<80x128xbf16>
    %cst = arith.constant dense<0.000000e+00> : vector<256x128xf32>
    %2 = tpu.matmul %0, %1, %cst {dimension_numbers = #tpu.dot_dimension_numbers<[1], [0], [0], [1], [0, 0, 1, 1], [], []>} : vector<256x80xbf16>, vector<80x128xbf16>, vector<256x128xf32> -> vector<256x128xf32>
    %c0_3 = arith.constant 0 : index
    %c0_4 = arith.constant 0 : index
    %3 = vector.load %arg3[%c0_3, %c0_4] : memref<256x128xf32, #tpu.memory_space<vmem>>, vector<256x128xf32>
    tpu.vector_store %arg3[%c0_3, %c0_4], %2 {strides = array<i32>} : memref<256x128xf32, #tpu.memory_space<vmem>>, vector<256x128xf32>,
    %cst_5 = arith.constant dense<0.000000e+00> : vector<128xf32>
    %4 = vector.multi_reduction <add>, %2, %cst_5 [0] : vector<256x128xf32> to vector<128xf32>
    %5 = vector.shape_cast %4 : vector<128xf32> to vector<1x128xf32>
    %6 = arith.mulf %2, %2 : vector<256x128xf32>
    %cst_6 = arith.constant dense<0.000000e+00> : vector<128xf32>
    %7 = vector.multi_reduction <add>, %6, %cst_6 [0] : vector<256x128xf32> to vector<128xf32>
    %8 = vector.shape_cast %7 : vector<128xf32> to vector<1x128xf32>
    %9 = tpu.concatenate %5, %8 in 0 : vector<1x128xf32>, vector<1x128xf32> -> vector<2x128xf32>
    %c0_7 = arith.constant 0 : index
    %c0_8 = arith.constant 0 : index
    %c0_9 = arith.constant 0 : index
    %10 = vector.load %arg4[%c0_7, %c0_8, %c0_9] : memref<1x2x128xf32, #tpu.memory_space<vmem>>, vector<1x2x128xf32>
    %11 = vector.shape_cast %10 : vector<1x2x128xf32> to vector<2x128xf32>
    %12 = vector.shape_cast %9 : vector<2x128xf32> to vector<1x2x128xf32>
    tpu.vector_store %arg4[%c0_7, %c0_8, %c0_9], %12 {strides = array<i32>} : memref<1x2x128xf32, #tpu.memory_space<vmem>>, vector<1x2x128xf32>,
    return
  }
  func.func @transform_0(%arg0: i32) -> (i32, i32) {
    %c0_i32 = arith.constant 0 : i32
    %c0_i32_0 = arith.constant 0 : i32
    return %arg0, %c0_i32 : i32, i32
  }
  func.func @transform_1(%arg0: i32) -> (i32, i32) {
    %c0_i32 = arith.constant 0 : i32
    %c0_i32_0 = arith.constant 0 : i32
    %c0_i32_1 = arith.constant 0 : i32
    return %c0_i32, %c0_i32_0 : i32, i32
  }
  func.func @transform_2(%arg0: i32) -> (i32, i32) {
    %c0_i32 = arith.constant 0 : i32
    %c0_i32_0 = arith.constant 0 : i32
    return %arg0, %c0_i32 : i32, i32
  }
  func.func @transform_3(%arg0: i32) -> (i32, i32, i32) {
    %c0_i32 = arith.constant 0 : i32
    %c0_i32_0 = arith.constant 0 : i32
    %c0_i32_1 = arith.constant 0 : i32
    return %arg0, %c0_i32, %c0_i32_0 : i32, i32, i32
  }
}

module attributes {stable_mosaic.version = 11 : i64} {
  func.func @_bn_relu_pool_kernel(%arg0: i32, %arg1: memref<256x128xf32, #tpu.memory_space<vmem>>, %arg2: memref<1x128xf32, #tpu.memory_space<vmem>>, %arg3: memref<1x128xf32, #tpu.memory_space<vmem>>, %arg4: memref<256x128xf32, #tpu.memory_space<vmem>>, %arg5: memref<64x128xf32, #tpu.memory_space<vmem>>) attributes {dimension_semantics = [#tpu.dimension_semantics<parallel>], iteration_bounds = array<i64: 2>, scalar_prefetch = 0 : i64, scratch_operands = 0 : i64, tpu.core_type = #tpu.core_type<tc>, window_params = [{transform_indices = @transform_0, window_bounds = array<i64: 256, 128>}, {pipeline_mode = #tpu.pipeline_mode<synchronous>, transform_indices = @transform_1, window_bounds = array<i64: 1, 128>}, {pipeline_mode = #tpu.pipeline_mode<synchronous>, transform_indices = @transform_2, window_bounds = array<i64: 1, 128>}, {transform_indices = @transform_3, window_bounds = array<i64: 256, 128>}, {transform_indices = @transform_4, window_bounds = array<i64: 64, 128>}]} {
    %c0 = arith.constant 0 : index
    %c0_0 = arith.constant 0 : index
    %0 = vector.load %arg2[%c0, %c0_0] : memref<1x128xf32, #tpu.memory_space<vmem>>, vector<1x128xf32>
    %c0_1 = arith.constant 0 : index
    %c0_2 = arith.constant 0 : index
    %1 = vector.load %arg3[%c0_1, %c0_2] : memref<1x128xf32, #tpu.memory_space<vmem>>, vector<1x128xf32>
    %c0_3 = arith.constant 0 : index
    %c0_4 = arith.constant 0 : index
    %2 = vector.load %arg1[%c0_3, %c0_4] : memref<256x128xf32, #tpu.memory_space<vmem>>, vector<256x128xf32>
    %3 = vector.broadcast %0 : vector<1x128xf32> to vector<256x128xf32>
    %4 = arith.mulf %2, %3 : vector<256x128xf32>
    %5 = vector.broadcast %1 : vector<1x128xf32> to vector<256x128xf32>
    %6 = arith.addf %4, %5 : vector<256x128xf32>
    %cst = arith.constant 0.000000e+00 : f32
    %7 = vector.broadcast %cst : f32 to vector<256x128xf32>
    %8 = arith.maximumf %6, %7 : vector<256x128xf32>
    %c0_5 = arith.constant 0 : index
    %c0_6 = arith.constant 0 : index
    %9 = vector.load %arg4[%c0_5, %c0_6] : memref<256x128xf32, #tpu.memory_space<vmem>>, vector<256x128xf32>
    tpu.vector_store %arg4[%c0_5, %c0_6], %8 {strides = array<i32>} : memref<256x128xf32, #tpu.memory_space<vmem>>, vector<256x128xf32>,
    %c0_7 = arith.constant 0 : index
    %c0_8 = arith.constant 0 : index
    %10 = tpu.strided_load %arg1[%c0_7, %c0_8] {strides = array<i32: 2, 1>} : memref<256x128xf32, #tpu.memory_space<vmem>>, vector<128x128xf32>
    %11 = vector.broadcast %0 : vector<1x128xf32> to vector<128x128xf32>
    %12 = arith.mulf %10, %11 : vector<128x128xf32>
    %13 = vector.broadcast %1 : vector<1x128xf32> to vector<128x128xf32>
    %14 = arith.addf %12, %13 : vector<128x128xf32>
    %cst_9 = arith.constant 0.000000e+00 : f32
    %15 = vector.broadcast %cst_9 : f32 to vector<128x128xf32>
    %16 = arith.maximumf %14, %15 : vector<128x128xf32>
    %c1 = arith.constant 1 : index
    %c0_10 = arith.constant 0 : index
    %17 = tpu.strided_load %arg1[%c1, %c0_10] {strides = array<i32: 2, 1>} : memref<256x128xf32, #tpu.memory_space<vmem>>, vector<128x128xf32>
    %18 = vector.broadcast %0 : vector<1x128xf32> to vector<128x128xf32>
    %19 = arith.mulf %17, %18 : vector<128x128xf32>
    %20 = vector.broadcast %1 : vector<1x128xf32> to vector<128x128xf32>
    %21 = arith.addf %19, %20 : vector<128x128xf32>
    %cst_11 = arith.constant 0.000000e+00 : f32
    %22 = vector.broadcast %cst_11 : f32 to vector<128x128xf32>
    %23 = arith.maximumf %21, %22 : vector<128x128xf32>
    %24 = arith.maximumf %16, %23 : vector<128x128xf32>
    %25 = vector.shape_cast %24 : vector<128x128xf32> to vector<8x2x8x128xf32>
    %cst_12 = arith.constant dense<0xFF800000> : vector<8x8x128xf32>
    %26 = vector.multi_reduction <maximumf>, %25, %cst_12 [1] : vector<8x2x8x128xf32> to vector<8x8x128xf32>
    %27 = vector.shape_cast %26 : vector<8x8x128xf32> to vector<64x128xf32>
    %c0_13 = arith.constant 0 : index
    %c0_14 = arith.constant 0 : index
    %28 = vector.load %arg5[%c0_13, %c0_14] : memref<64x128xf32, #tpu.memory_space<vmem>>, vector<64x128xf32>
    tpu.vector_store %arg5[%c0_13, %c0_14], %27 {strides = array<i32>} : memref<64x128xf32, #tpu.memory_space<vmem>>, vector<64x128xf32>,
    return
  }
  func.func @transform_0(%arg0: i32) -> (i32, i32) {
    %c0_i32 = arith.constant 0 : i32
    %c0_i32_0 = arith.constant 0 : i32
    return %arg0, %c0_i32 : i32, i32
  }
  func.func @transform_1(%arg0: i32) -> (i32, i32) {
    %c0_i32 = arith.constant 0 : i32
    %c0_i32_0 = arith.constant 0 : i32
    %c0_i32_1 = arith.constant 0 : i32
    return %c0_i32, %c0_i32_0 : i32, i32
  }
  func.func @transform_2(%arg0: i32) -> (i32, i32) {
    %c0_i32 = arith.constant 0 : i32
    %c0_i32_0 = arith.constant 0 : i32
    %c0_i32_1 = arith.constant 0 : i32
    return %c0_i32, %c0_i32_0 : i32, i32
  }
  func.func @transform_3(%arg0: i32) -> (i32, i32) {
    %c0_i32 = arith.constant 0 : i32
    %c0_i32_0 = arith.constant 0 : i32
    return %arg0, %c0_i32 : i32, i32
  }
  func.func @transform_4(%arg0: i32) -> (i32, i32) {
    %c0_i32 = arith.constant 0 : i32
    %c0_i32_0 = arith.constant 0 : i32
    return %arg0, %c0_i32 : i32, i32
  }
}

</mosaic_0001>

<llo_original>
// kernel: encoder_block_forward.5
$region0: #{encoder_block_forward.5}
  #allocation0 [shape = 'u32[]', space=smem, size = 0x4, offset = 0x4, fixed_abs, tag = 'smem constant byte address 0x4 - core index']
  #allocation1 [shape = 'u32[144,128]{1,0:T(1,128)}', space=vmem, size = 0x12000, scoped, tag = 'internal scratch']
  %s0 = inlined_call_operand.vmem [shape: f32[512,128], index: 0, kind: input, shape index: {}]
  %s1 = inlined_call_operand.vmem [shape: f32[1,128], index: 1, kind: input, shape index: {}]
  %s2 = inlined_call_operand.vmem [shape: f32[1,128], index: 2, kind: input, shape index: {}]
  %s3 = inlined_call_operand.vmem [shape: bf16[512,128], index: 3, kind: output, shape index: {}]
  %s4 = sld [smem:[#allocation0]]
  $region45: #{encoder_block_forward.5} parent=0
    _
  %s6 = ssub.s32 1, %s4
  %s7 = scalar_select 0, %s6, %s4
  loop: start=0, step=1, limit=4
  $region2: #{encoder_block_forward.5} parent=0 // loop_pre_header
    _
  $region3: #{encoder_block_forward.5} parent=0 // loop_header
    %s9 = sphi 0, %s13
    %p10 = scmp.ge.s32.totalorder %s9, 4
    %s19 = sphi 0, %s21
    %s22 = sphi 0, %s19
    %s23 = sphi 0, %s22
    %s39 = sphi 0, %s23
    %s43 = sphi 0, %s43
    %s45 = sphi 0, %s43
    %s46 = sphi 0, %s45
    %s60 = sphi 0, %s46
    %s64 = sphi 0, %s64
    %s66 = sphi 0, %s64
    %s67 = sphi 0, %s66
    %s81 = sphi 0, %s67
    %s87 = sphi 0, %s89
    %s90 = sphi 0, %s87
    %s91 = sphi 0, %s90
    %s107 = sphi 0, %s91
  $region4: #{encoder_block_forward.5} parent=0 // loop_header_branch
    %12 = sbr.rel (%p10) target = $region8
  $region5: #{encoder_block_forward.5} parent=0 // loop_body
    %s14 = ssub.s32 %s9, 1
    %s15 = ssub.s32 %s9, 2
    %s16 = sadd.s32 %s9, 1
    %s17 = ssub.s32 %s9, %s16
    %p18 = scmp.eq.s32.totalorder %s17, 0
    %s20 = sadd.s32 %s19, 1
    %s21 = scalar_select %p18, %s19, %s20
    %p24 = pneg %p18
    %p25 = scmp.eq.s32.totalorder %s9, 1
    %p26 = por %p24, %p25
    %p27 = scmp.ne.s32.totalorder %s19, %s22
    %p28 = scmp.eq.s32.totalorder %s9, 0
    %p29 = por %p27, %p28
    %p30 = scmp.ne.s32.totalorder %s19, %s22
    %p31 = scmp.eq.s32.totalorder %s14, 1
    %p32 = por %p30, %p31
    %p33 = scmp.ne.s32.totalorder %s22, %s23
    %p34 = scmp.eq.s32.totalorder %s14, 0
    %p35 = por %p33, %p34
    %p36 = scmp.ne.s32.totalorder %s22, %s23
    %p37 = scmp.eq.s32.totalorder %s15, 1
    %p38 = por %p36, %p37
    %p40 = scmp.ne.s32.totalorder %s23, %s39
    %p41 = scmp.eq.s32.totalorder %s15, 0
    %p42 = por %p40, %p41
    %s44 = sadd.s32 %s43, 1
    %p47 = scmp.eq.s32.totalorder %s9, 1
    %p48 = scmp.ne.s32.totalorder %s43, %s45
    %p49 = scmp.eq.s32.totalorder %s9, 0
    %p50 = por %p48, %p49
    %p51 = scmp.ne.s32.totalorder %s43, %s45
    %p52 = scmp.eq.s32.totalorder %s14, 1
    %p53 = por %p51, %p52
    %p54 = scmp.ne.s32.totalorder %s45, %s46
    %p55 = scmp.eq.s32.totalorder %s14, 0
    %p56 = por %p54, %p55
    %p57 = scmp.ne.s32.totalorder %s45, %s46
    %p58 = scmp.eq.s32.totalorder %s15, 1
    %p59 = por %p57, %p58
    %p61 = scmp.ne.s32.totalorder %s46, %s60
    %p62 = scmp.eq.s32.totalorder %s15, 0
    %p63 = por %p61, %p62
    %s65 = sadd.s32 %s64, 1
    %p68 = scmp.eq.s32.totalorder %s9, 1
    %p69 = scmp.ne.s32.totalorder %s64, %s66
    %p70 = scmp.eq.s32.totalorder %s9, 0
    %p71 = por %p69, %p70
    %p72 = scmp.ne.s32.totalorder %s64, %s66
    %p73 = scmp.eq.s32.totalorder %s14, 1
    %p74 = por %p72, %p73
    %p75 = scmp.ne.s32.totalorder %s66, %s67
    %p76 = scmp.eq.s32.totalorder %s14, 0
    %p77 = por %p75, %p76
    %p78 = scmp.ne.s32.totalorder %s66, %s67
    %p79 = scmp.eq.s32.totalorder %s15, 1
    %p80 = por %p78, %p79
    %p82 = scmp.ne.s32.totalorder %s67, %s81
    %p83 = scmp.eq.s32.totalorder %s15, 0
    %p84 = por %p82, %p83
    %s85 = ssub.s32 %s9, %s16
    %p86 = scmp.eq.s32.totalorder %s85, 0
    %s88 = sadd.s32 %s87, 1
    %s89 = scalar_select %p86, %s87, %s88
    %p92 = pneg %p86
    %p93 = scmp.eq.s32.totalorder %s9, 1
    %p94 = por %p92, %p93
    %p95 = scmp.ne.s32.totalorder %s87, %s90
    %p96 = scmp.eq.s32.totalorder %s9, 0
    %p97 = por %p95, %p96
    %p98 = scmp.ne.s32.totalorder %s87, %s90
    %p99 = scmp.eq.s32.totalorder %s14, 1
    %p100 = por %p98, %p99
    %p101 = scmp.ne.s32.totalorder %s90, %s91
    %p102 = scmp.eq.s32.totalorder %s14, 0
    %p103 = por %p101, %p102
    %p104 = scmp.ne.s32.totalorder %s90, %s91
    %p105 = scmp.eq.s32.totalorder %s15, 1
    %p106 = por %p104, %p105
    %p108 = scmp.ne.s32.totalorder %s91, %s107
    %p109 = scmp.eq.s32.totalorder %s15, 0
    %p110 = por %p108, %p109
    %p111 = scmp.le.s32.totalorder 1, %s9
    %p112 = scmp.lt.s32.totalorder %s9, 3
    %p113 = pnand %p111, %p112
    %p114 = pneg %p113
    // Predicated region
    $region9: #{encoder_block_forward.5} parent=5 // pred_check
      _
    $region10: #{encoder_block_forward.5} parent=5 // pred_check_branch
      %116 = sbr.rel (%p113) target = $region12
    $region11: #{encoder_block_forward.5} parent=5 // pred_region
      %s117 = ssub.s32 %s9, 1
      // Predicated region
      $region13: #{encoder_block_forward.5} parent=11 // pred_check
        %p118 = pneg %p56
      $region14: #{encoder_block_forward.5} parent=11 // pred_check_branch
        %120 = sbr.rel (%p118) target = $region16
      $region15: #{encoder_block_forward.5} parent=11 // pred_region
        _
      $region16: #{encoder_block_forward.5} parent=11 // pred_fallthru
        _
      // Predicated region
      $region17: #{encoder_block_forward.5} parent=11 // pred_check
        %p121 = pneg %p77
      $region18: #{encoder_block_forward.5} parent=11 // pred_check_branch
        %123 = sbr.rel (%p121) target = $region20
      $region19: #{encoder_block_forward.5} parent=11 // pred_region
        _
      $region20: #{encoder_block_forward.5} parent=11 // pred_fallthru
        _
    $region12: #{encoder_block_forward.5} parent=5 // pred_fallthru
      _
    %p124 = scmp.lt.s32.totalorder %s9, 2
    // Predicated region
    $region21: #{encoder_block_forward.5} parent=5 // pred_check
      %p125 = pneg %p124
    $region22: #{encoder_block_forward.5} parent=5 // pred_check_branch
      %127 = sbr.rel (%p125) target = $region24
    $region23: #{encoder_block_forward.5} parent=5 // pred_region
      // Predicated region
      $region25: #{encoder_block_forward.5} parent=23 // pred_check
        %p128 = pneg %p29
      $region26: #{encoder_block_forward.5} parent=23 // pred_check_branch
        %130 = sbr.rel (%p128) target = $region28
      $region27: #{encoder_block_forward.5} parent=23 // pred_region
        %s131 = smul.u32 32, %s9
        %p132 = scmp.lt.s32.totalorder %s131, 63
        %s133 = scalar_select %p132, %s131, 63
        %s134 = smul.addr %s133, 8
        %s135 = scalar_lea.vmem %s0, %s134
        %s136 = smul.u32 32, %s9
      $region28: #{encoder_block_forward.5} parent=23 // pred_fallthru
        _
    $region24: #{encoder_block_forward.5} parent=5 // pred_fallthru
      _
    %p137 = scmp.le.s32.totalorder 1, %s9
    %p138 = scmp.lt.s32.totalorder %s9, 3
    %p139 = pnand %p137, %p138
    %p140 = pneg %p139
    // Predicated region
    $region29: #{encoder_block_forward.5} parent=5 // pred_check
      _
    $region30: #{encoder_block_forward.5} parent=5 // pred_check_branch
      %142 = sbr.rel (%p139) target = $region32
    $region31: #{encoder_block_forward.5} parent=5 // pred_region
      %s143 = ssub.s32 %s9, 1
      %s144 = smul.u32 32, %s14
      %p145 = scmp.lt.s32.totalorder %s144, 63
      %s146 = scalar_select %p145, %s144, 63
      %s147 = smul.addr %s146, 8
      %s148 = scalar_lea.vmem %s0, %s147
      %p149 = pneg %p35
      %p150 = pneg %p32
      %p151 = pneg %p56
      %p152 = pneg %p53
      %p153 = pneg %p77
      %p154 = pneg %p74
      %p155 = pneg %p103
      %p156 = pneg %p100
      %s157 = smul.u32 32, %s14
      %p158 = scmp.lt.s32.totalorder %s157, 63
      %s159 = scalar_select %p158, %s157, 63
      %s160 = smul.addr %s159, 4
      %s161 = scalar_lea.vmem %s3, %s160
      %s162 = smul.u32 32, %s14
      %p163 = scmp.lt.s32.totalorder %s162, 63
      %s164 = scalar_select %p163, %s162, 63
      %s165 = smul.addr %s164, 8
      %s166 = scalar_lea.vmem %s0, %s165
      %s167 = smul.u32 32, %s14
      %s168 = smul.u32 32, %s14
      %p169 = scmp.lt.s32.totalorder %s168, 63
      %s170 = scalar_select %p169, %s168, 63
      %s171 = smul.addr %s170, 4
      %s172 = scalar_lea.vmem %s3, %s171
      %s173 = smul.u32 32, %s14
      %v174 = vld [vmem:[%s166] sm:$0xff]
      %v175 = vld [vmem:[%s166 + $0x8] sm:$0xff]
      %v176 = vld [vmem:[%s166 + $0x10] sm:$0xff]
      %v177 = vld [vmem:[%s166 + $0x18] sm:$0xff]
      %v178 = vld [vmem:[%s166 + $0x20] sm:$0xff]
      %v179 = vld [vmem:[%s166 + $0x28] sm:$0xff]
      %v180 = vld [vmem:[%s166 + $0x30] sm:$0xff]
      %v181 = vld [vmem:[%s166 + $0x38] sm:$0xff]
      %v182 = vld [vmem:[%s166 + $0x40] sm:$0xff]
      %v183 = vld [vmem:[%s166 + $0x48] sm:$0xff]
      %v184 = vld [vmem:[%s166 + $0x50] sm:$0xff]
      %v185 = vld [vmem:[%s166 + $0x58] sm:$0xff]
      %v186 = vld [vmem:[%s166 + $0x60] sm:$0xff]
      %v187 = vld [vmem:[%s166 + $0x68] sm:$0xff]
      %v188 = vld [vmem:[%s166 + $0x70] sm:$0xff]
      %v189 = vld [vmem:[%s166 + $0x78] sm:$0xff]
      %v190 = vld [vmem:[%s166 + $0x80] sm:$0xff]
      %v191 = vld [vmem:[%s166 + $0x88] sm:$0xff]
      %v192 = vld [vmem:[%s166 + $0x90] sm:$0xff]
      %v193 = vld [vmem:[%s166 + $0x98] sm:$0xff]
      %v194 = vld [vmem:[%s166 + $0xa0] sm:$0xff]
      %v195 = vld [vmem:[%s166 + $0xa8] sm:$0xff]
      %v196 = vld [vmem:[%s166 + $0xb0] sm:$0xff]
      %v197 = vld [vmem:[%s166 + $0xb8] sm:$0xff]
      %v198 = vld [vmem:[%s166 + $0xc0] sm:$0xff]
      %v199 = vld [vmem:[%s166 + $0xc8] sm:$0xff]
      %v200 = vld [vmem:[%s166 + $0xd0] sm:$0xff]
      %v201 = vld [vmem:[%s166 + $0xd8] sm:$0xff]
      %v202 = vld [vmem:[%s166 + $0xe0] sm:$0xff]
      %v203 = vld [vmem:[%s166 + $0xe8] sm:$0xff]
      %v204 = vld [vmem:[%s166 + $0xf0] sm:$0xff]
      %v205 = vld [vmem:[%s166 + $0xf8] sm:$0xff]
      %v206 = vld [vmem:[%s1] sm:$0x1]
      %v208 = vlaneseq
      %v209 = vshrl.u32 %v208, 7
      %v210 = vsub.s32 0, %v209
      %v211 = vrot.slane %v206, %v210
      %v213 = vmul.f32 %v174, %v211
      %v214 = vmul.f32 %v175, %v211
      %v215 = vmul.f32 %v176, %v211
      %v216 = vmul.f32 %v177, %v211
      %v217 = vmul.f32 %v178, %v211
      %v218 = vmul.f32 %v179, %v211
      %v219 = vmul.f32 %v180, %v211
      %v220 = vmul.f32 %v181, %v211
      %v221 = vmul.f32 %v182, %v211
      %v222 = vmul.f32 %v183, %v211
      %v223 = vmul.f32 %v184, %v211
      %v224 = vmul.f32 %v185, %v211
      %v225 = vmul.f32 %v186, %v211
      %v226 = vmul.f32 %v187, %v211
      %v227 = vmul.f32 %v188, %v211
      %v228 = vmul.f32 %v189, %v211
      %v229 = vmul.f32 %v190, %v211
      %v230 = vmul.f32 %v191, %v211
      %v231 = vmul.f32 %v192, %v211
      %v232 = vmul.f32 %v193, %v211
      %v233 = vmul.f32 %v194, %v211
      %v234 = vmul.f32 %v195, %v211
      %v235 = vmul.f32 %v196, %v211
      %v236 = vmul.f32 %v197, %v211
      %v237 = vmul.f32 %v198, %v211
      %v238 = vmul.f32 %v199, %v211
      %v239 = vmul.f32 %v200, %v211
      %v240 = vmul.f32 %v201, %v211
      %v241 = vmul.f32 %v202, %v211
      %v242 = vmul.f32 %v203, %v211
      %v243 = vmul.f32 %v204, %v211
      %v244 = vmul.f32 %v205, %v211
      %v245 = vld [vmem:[%s2] sm:$0x1]
      %v247 = vlaneseq
      %v248 = vshrl.u32 %v247, 7
      %v249 = vsub.s32 0, %v248
      %v250 = vrot.slane %v245, %v249
      %v252 = vadd.f32 %v213, %v250
      %v253 = vadd.f32 %v214, %v250
      %v254 = vadd.f32 %v215, %v250
      %v255 = vadd.f32 %v216, %v250
      %v256 = vadd.f32 %v217, %v250
      %v257 = vadd.f32 %v218, %v250
      %v258 = vadd.f32 %v219, %v250
      %v259 = vadd.f32 %v220, %v250
      %v260 = vadd.f32 %v221, %v250
      %v261 = vadd.f32 %v222, %v250
      %v262 = vadd.f32 %v223, %v250
      %v263 = vadd.f32 %v224, %v250
      %v264 = vadd.f32 %v225, %v250
      %v265 = vadd.f32 %v226, %v250
      %v266 = vadd.f32 %v227, %v250
      %v267 = vadd.f32 %v228, %v250
      %v268 = vadd.f32 %v229, %v250
      %v269 = vadd.f32 %v230, %v250
      %v270 = vadd.f32 %v231, %v250
      %v271 = vadd.f32 %v232, %v250
      %v272 = vadd.f32 %v233, %v250
      %v273 = vadd.f32 %v234, %v250
      %v274 = vadd.f32 %v235, %v250
      %v275 = vadd.f32 %v236, %v250
      %v276 = vadd.f32 %v237, %v250
      %v277 = vadd.f32 %v238, %v250
      %v278 = vadd.f32 %v239, %v250
      %v279 = vadd.f32 %v240, %v250
      %v280 = vadd.f32 %v241, %v250
      %v281 = vadd.f32 %v242, %v250
      %v282 = vadd.f32 %v243, %v250
      %v283 = vadd.f32 %v244, %v250
      %v284 = vmax.f32 %v252, 0.0
      %v285 = vmax.f32 %v253, 0.0
      %v286 = vmax.f32 %v254, 0.0
      %v287 = vmax.f32 %v255, 0.0
      %v288 = vmax.f32 %v256, 0.0
      %v289 = vmax.f32 %v257, 0.0
      %v290 = vmax.f32 %v258, 0.0
      %v291 = vmax.f32 %v259, 0.0
      %v292 = vmax.f32 %v260, 0.0
      %v293 = vmax.f32 %v261, 0.0
      %v294 = vmax.f32 %v262, 0.0
      %v295 = vmax.f32 %v263, 0.0
      %v296 = vmax.f32 %v264, 0.0
      %v297 = vmax.f32 %v265, 0.0
      %v298 = vmax.f32 %v266, 0.0
      %v299 = vmax.f32 %v267, 0.0
      %v300 = vmax.f32 %v268, 0.0
      %v301 = vmax.f32 %v269, 0.0
      %v302 = vmax.f32 %v270, 0.0
      %v303 = vmax.f32 %v271, 0.0
      %v304 = vmax.f32 %v272, 0.0
      %v305 = vmax.f32 %v273, 0.0
      %v306 = vmax.f32 %v274, 0.0
      %v307 = vmax.f32 %v275, 0.0
      %v308 = vmax.f32 %v276, 0.0
      %v309 = vmax.f32 %v277, 0.0
      %v310 = vmax.f32 %v278, 0.0
      %v311 = vmax.f32 %v279, 0.0
      %v312 = vmax.f32 %v280, 0.0
      %v313 = vmax.f32 %v281, 0.0
      %v314 = vmax.f32 %v282, 0.0
      %v315 = vmax.f32 %v283, 0.0
      %v316 = vpack.c.bf16 %v285, %v284
      %v317 = vpack.c.bf16 %v287, %v286
      %v318 = vpack.c.bf16 %v289, %v288
      %v319 = vpack.c.bf16 %v291, %v290
      %v320 = vpack.c.bf16 %v293, %v292
      %v321 = vpack.c.bf16 %v295, %v294
      %v322 = vpack.c.bf16 %v297, %v296
      %v323 = vpack.c.bf16 %v299, %v298
      %v324 = vpack.c.bf16 %v301, %v300
      %v325 = vpack.c.bf16 %v303, %v302
      %v326 = vpack.c.bf16 %v305, %v304
      %v327 = vpack.c.bf16 %v307, %v306
      %v328 = vpack.c.bf16 %v309, %v308
      %v329 = vpack.c.bf16 %v311, %v310
      %v330 = vpack.c.bf16 %v313, %v312
      %v331 = vpack.c.bf16 %v315, %v314
      %v348 = vunpack.c.l.b16 %v316
      %v349 = vunpack.c.h.b16 %v316
      %v350 = vunpack.c.l.b16 %v317
      %v351 = vunpack.c.h.b16 %v317
      %v352 = vunpack.c.l.b16 %v318
      %v353 = vunpack.c.h.b16 %v318
      %v354 = vunpack.c.l.b16 %v319
      %v355 = vunpack.c.h.b16 %v319
      %v356 = vunpack.c.l.b16 %v320
      %v357 = vunpack.c.h.b16 %v320
      %v358 = vunpack.c.l.b16 %v321
      %v359 = vunpack.c.h.b16 %v321
      %v360 = vunpack.c.l.b16 %v322
      %v361 = vunpack.c.h.b16 %v322
      %v362 = vunpack.c.l.b16 %v323
      %v363 = vunpack.c.h.b16 %v323
      %v364 = vunpack.c.l.b16 %v324
      %v365 = vunpack.c.h.b16 %v324
      %v366 = vunpack.c.l.b16 %v325
      %v367 = vunpack.c.h.b16 %v325
      %v368 = vunpack.c.l.b16 %v326
      %v369 = vunpack.c.h.b16 %v326
      %v370 = vunpack.c.l.b16 %v327
      %v371 = vunpack.c.h.b16 %v327
      %v372 = vunpack.c.l.b16 %v328
      %v373 = vunpack.c.h.b16 %v328
      %v374 = vunpack.c.l.b16 %v329
      %v375 = vunpack.c.h.b16 %v329
      %v376 = vunpack.c.l.b16 %v330
      %v377 = vunpack.c.h.b16 %v330
      %v378 = vunpack.c.l.b16 %v331
      %v379 = vunpack.c.h.b16 %v331
      %v380 = vpack.c.b16 %v348, %v348
      %v381 = vpack.c.b16 %v349, %v349
      %v382 = vpack.c.b16 %v350, %v350
      %v383 = vpack.c.b16 %v351, %v351
      %v384 = vpack.c.b16 %v352, %v352
      %v385 = vpack.c.b16 %v353, %v353
      %v386 = vpack.c.b16 %v354, %v354
      %v387 = vpack.c.b16 %v355, %v355
      %v388 = vpack.c.b16 %v356, %v356
      %v389 = vpack.c.b16 %v357, %v357
      %v390 = vpack.c.b16 %v358, %v358
      %v391 = vpack.c.b16 %v359, %v359
      %v392 = vpack.c.b16 %v360, %v360
      %v393 = vpack.c.b16 %v361, %v361
      %v394 = vpack.c.b16 %v362, %v362
      %v395 = vpack.c.b16 %v363, %v363
      %v396 = vpack.c.b16 %v364, %v364
      %v397 = vpack.c.b16 %v365, %v365
      %v398 = vpack.c.b16 %v366, %v366
      %v399 = vpack.c.b16 %v367, %v367
      %v400 = vpack.c.b16 %v368, %v368
      %v401 = vpack.c.b16 %v369, %v369
      %v402 = vpack.c.b16 %v370, %v370
      %v403 = vpack.c.b16 %v371, %v371
      %v404 = vpack.c.b16 %v372, %v372
      %v405 = vpack.c.b16 %v373, %v373
      %v406 = vpack.c.b16 %v374, %v374
      %v407 = vpack.c.b16 %v375, %v375
      %v408 = vpack.c.b16 %v376, %v376
      %v409 = vpack.c.b16 %v377, %v377
      %v410 = vpack.c.b16 %v378, %v378
      %v411 = vpack.c.b16 %v379, %v379
      %444 = vst [vmem:[%s172] sm:$0xf] %v380
      %445 = vst [vmem:[%s172 + $0x4] sm:$0xf] %v381
      %446 = vst [vmem:[%s172 + $0x8] sm:$0xf] %v382
      %447 = vst [vmem:[%s172 + $0xc] sm:$0xf] %v383
      %448 = vst [vmem:[%s172 + $0x10] sm:$0xf] %v384
      %449 = vst [vmem:[%s172 + $0x14] sm:$0xf] %v385
      %450 = vst [vmem:[%s172 + $0x18] sm:$0xf] %v386
      %451 = vst [vmem:[%s172 + $0x1c] sm:$0xf] %v387
      %452 = vst [vmem:[%s172 + $0x20] sm:$0xf] %v388
      %453 = vst [vmem:[%s172 + $0x24] sm:$0xf] %v389
      %454 = vst [vmem:[%s172 + $0x28] sm:$0xf] %v390
      %455 = vst [vmem:[%s172 + $0x2c] sm:$0xf] %v391
      %456 = vst [vmem:[%s172 + $0x30] sm:$0xf] %v392
      %457 = vst [vmem:[%s172 + $0x34] sm:$0xf] %v393
      %458 = vst [vmem:[%s172 + $0x38] sm:$0xf] %v394
      %459 = vst [vmem:[%s172 + $0x3c] sm:$0xf] %v395
      %460 = vst [vmem:[%s172 + $0x40] sm:$0xf] %v396
      %461 = vst [vmem:[%s172 + $0x44] sm:$0xf] %v397
      %462 = vst [vmem:[%s172 + $0x48] sm:$0xf] %v398
      %463 = vst [vmem:[%s172 + $0x4c] sm:$0xf] %v399
      %464 = vst [vmem:[%s172 + $0x50] sm:$0xf] %v400
      %465 = vst [vmem:[%s172 + $0x54] sm:$0xf] %v401
      %466 = vst [vmem:[%s172 + $0x58] sm:$0xf] %v402
      %467 = vst [vmem:[%s172 + $0x5c] sm:$0xf] %v403
      %468 = vst [vmem:[%s172 + $0x60] sm:$0xf] %v404
      %469 = vst [vmem:[%s172 + $0x64] sm:$0xf] %v405
      %470 = vst [vmem:[%s172 + $0x68] sm:$0xf] %v406
      %471 = vst [vmem:[%s172 + $0x6c] sm:$0xf] %v407
      %472 = vst [vmem:[%s172 + $0x70] sm:$0xf] %v408
      %473 = vst [vmem:[%s172 + $0x74] sm:$0xf] %v409
      %474 = vst [vmem:[%s172 + $0x78] sm:$0xf] %v410
      %475 = vst [vmem:[%s172 + $0x7c] sm:$0xf] %v411
      %s476 = smul.u32 32, %s14
      %p477 = scmp.lt.s32.totalorder %s476, 63
      %s478 = scalar_select %p477, %s476, 63
      %s479 = smul.addr %s478, 4
      %s480 = scalar_lea.vmem %s3, %s479
      // Predicated region
      $region33: #{encoder_block_forward.5} parent=31 // pred_check
        %p481 = pneg %p100
      $region34: #{encoder_block_forward.5} parent=31 // pred_check_branch
        %483 = sbr.rel (%p481) target = $region36
      $region35: #{encoder_block_forward.5} parent=31 // pred_region
        %s484 = smul.u32 32, %s14
      $region36: #{encoder_block_forward.5} parent=31 // pred_fallthru
        _
    $region32: #{encoder_block_forward.5} parent=5 // pred_fallthru
      _
    %p485 = scmp.le.s32.totalorder 2, %s9
    // Predicated region
    $region37: #{encoder_block_forward.5} parent=5 // pred_check
      %p486 = pneg %p485
    $region38: #{encoder_block_forward.5} parent=5 // pred_check_branch
      %488 = sbr.rel (%p486) target = $region40
    $region39: #{encoder_block_forward.5} parent=5 // pred_region
      %s489 = ssub.s32 %s9, 2
      // Predicated region
      $region41: #{encoder_block_forward.5} parent=39 // pred_check
        %p490 = pneg %p106
      $region42: #{encoder_block_forward.5} parent=39 // pred_check_branch
        %492 = sbr.rel (%p490) target = $region44
      $region43: #{encoder_block_forward.5} parent=39 // pred_region
        %s493 = smul.u32 32, %s15
        %p494 = scmp.lt.s32.totalorder %s493, 63
        %s495 = scalar_select %p494, %s493, 63
        %s496 = smul.addr %s495, 4
        %s497 = scalar_lea.vmem %s3, %s496
      $region44: #{encoder_block_forward.5} parent=39 // pred_fallthru
        _
    $region40: #{encoder_block_forward.5} parent=5 // pred_fallthru
      _
  $region6: #{encoder_block_forward.5} parent=0 // loop_footer
    %s13 = sadd.s32 1, %s9
  $region7: #{encoder_block_forward.5} parent=0 // loop_footer_branch
    %8 = sbr.rel target = $region3
  $region8: #{encoder_block_forward.5} parent=0 // loop_exit
    _

// kernel: encoder_block_forward.4
$region0: #{encoder_block_forward.4}
  #allocation0 [shape = 'u32[]', space=smem, size = 0x4, offset = 0x4, fixed_abs, tag = 'smem constant byte address 0x4 - core index']
  #allocation1 [shape = 'u32[144,128]{1,0:T(1,128)}', space=vmem, size = 0x12000, scoped, tag = 'internal scratch']
  %s0 = inlined_call_operand.vmem [shape: bf16[512,48], index: 0, kind: input, shape index: {}]
  %s1 = inlined_call_operand.vmem [shape: bf16[48,128], index: 1, kind: input, shape index: {}]
  %s2 = inlined_call_operand.vmem [shape: f32[512,128], index: 2, kind: output, shape index: {0}]
  %s3 = inlined_call_operand.vmem [shape: f32[2,2,128], index: 3, kind: output, shape index: {1}]
  %4 = xla_tuple %s2, %s3
  %s5 = sld [smem:[#allocation0]]
  $region49: #{encoder_block_forward.4} parent=0
    _
  %s7 = ssub.s32 1, %s5
  %s8 = scalar_select 0, %s7, %s5
  loop: start=0, step=1, limit=4
  $region2: #{encoder_block_forward.4} parent=0 // loop_pre_header
    _
  $region3: #{encoder_block_forward.4} parent=0 // loop_header
    %s10 = sphi 0, %s14
    %p11 = scmp.ge.s32.totalorder %s10, 4
    %s20 = sphi 0, %s22
    %s23 = sphi 0, %s20
    %s24 = sphi 0, %s23
    %s40 = sphi 0, %s24
    %s44 = sphi 0, %s44
    %s46 = sphi 0, %s44
    %s47 = sphi 0, %s46
    %s61 = sphi 0, %s47
    %s67 = sphi 0, %s69
    %s70 = sphi 0, %s67
    %s71 = sphi 0, %s70
    %s87 = sphi 0, %s71
    %s93 = sphi 0, %s95
    %s96 = sphi 0, %s93
    %s97 = sphi 0, %s96
    %s113 = sphi 0, %s97
  $region4: #{encoder_block_forward.4} parent=0 // loop_header_branch
    %13 = sbr.rel (%p11) target = $region8
  $region5: #{encoder_block_forward.4} parent=0 // loop_body
    %s15 = ssub.s32 %s10, 1
    %s16 = ssub.s32 %s10, 2
    %s17 = sadd.s32 %s10, 1
    %s18 = ssub.s32 %s10, %s17
    %p19 = scmp.eq.s32.totalorder %s18, 0
    %s21 = sadd.s32 %s20, 1
    %s22 = scalar_select %p19, %s20, %s21
    %p25 = pneg %p19
    %p26 = scmp.eq.s32.totalorder %s10, 1
    %p27 = por %p25, %p26
    %p28 = scmp.ne.s32.totalorder %s20, %s23
    %p29 = scmp.eq.s32.totalorder %s10, 0
    %p30 = por %p28, %p29
    %p31 = scmp.ne.s32.totalorder %s20, %s23
    %p32 = scmp.eq.s32.totalorder %s15, 1
    %p33 = por %p31, %p32
    %p34 = scmp.ne.s32.totalorder %s23, %s24
    %p35 = scmp.eq.s32.totalorder %s15, 0
    %p36 = por %p34, %p35
    %p37 = scmp.ne.s32.totalorder %s23, %s24
    %p38 = scmp.eq.s32.totalorder %s16, 1
    %p39 = por %p37, %p38
    %p41 = scmp.ne.s32.totalorder %s24, %s40
    %p42 = scmp.eq.s32.totalorder %s16, 0
    %p43 = por %p41, %p42
    %s45 = sadd.s32 %s44, 1
    %p48 = scmp.eq.s32.totalorder %s10, 1
    %p49 = scmp.ne.s32.totalorder %s44, %s46
    %p50 = scmp.eq.s32.totalorder %s10, 0
    %p51 = por %p49, %p50
    %p52 = scmp.ne.s32.totalorder %s44, %s46
    %p53 = scmp.eq.s32.totalorder %s15, 1
    %p54 = por %p52, %p53
    %p55 = scmp.ne.s32.totalorder %s46, %s47
    %p56 = scmp.eq.s32.totalorder %s15, 0
    %p57 = por %p55, %p56
    %p58 = scmp.ne.s32.totalorder %s46, %s47
    %p59 = scmp.eq.s32.totalorder %s16, 1
    %p60 = por %p58, %p59
    %p62 = scmp.ne.s32.totalorder %s47, %s61
    %p63 = scmp.eq.s32.totalorder %s16, 0
    %p64 = por %p62, %p63
    %s65 = ssub.s32 %s10, %s17
    %p66 = scmp.eq.s32.totalorder %s65, 0
    %s68 = sadd.s32 %s67, 1
    %s69 = scalar_select %p66, %s67, %s68
    %p72 = pneg %p66
    %p73 = scmp.eq.s32.totalorder %s10, 1
    %p74 = por %p72, %p73
    %p75 = scmp.ne.s32.totalorder %s67, %s70
    %p76 = scmp.eq.s32.totalorder %s10, 0
    %p77 = por %p75, %p76
    %p78 = scmp.ne.s32.totalorder %s67, %s70
    %p79 = scmp.eq.s32.totalorder %s15, 1
    %p80 = por %p78, %p79
    %p81 = scmp.ne.s32.totalorder %s70, %s71
    %p82 = scmp.eq.s32.totalorder %s15, 0
    %p83 = por %p81, %p82
    %p84 = scmp.ne.s32.totalorder %s70, %s71
    %p85 = scmp.eq.s32.totalorder %s16, 1
    %p86 = por %p84, %p85
    %p88 = scmp.ne.s32.totalorder %s71, %s87
    %p89 = scmp.eq.s32.totalorder %s16, 0
    %p90 = por %p88, %p89
    %s91 = ssub.s32 %s10, %s17
    %p92 = scmp.eq.s32.totalorder %s91, 0
    %s94 = sadd.s32 %s93, 1
    %s95 = scalar_select %p92, %s93, %s94
    %p98 = pneg %p92
    %p99 = scmp.eq.s32.totalorder %s10, 1
    %p100 = por %p98, %p99
    %p101 = scmp.ne.s32.totalorder %s93, %s96
    %p102 = scmp.eq.s32.totalorder %s10, 0
    %p103 = por %p101, %p102
    %p104 = scmp.ne.s32.totalorder %s93, %s96
    %p105 = scmp.eq.s32.totalorder %s15, 1
    %p106 = por %p104, %p105
    %p107 = scmp.ne.s32.totalorder %s96, %s97
    %p108 = scmp.eq.s32.totalorder %s15, 0
    %p109 = por %p107, %p108
    %p110 = scmp.ne.s32.totalorder %s96, %s97
    %p111 = scmp.eq.s32.totalorder %s16, 1
    %p112 = por %p110, %p111
    %p114 = scmp.ne.s32.totalorder %s97, %s113
    %p115 = scmp.eq.s32.totalorder %s16, 0
    %p116 = por %p114, %p115
    %p117 = scmp.le.s32.totalorder 1, %s10
    %p118 = scmp.lt.s32.totalorder %s10, 3
    %p119 = pnand %p117, %p118
    %p120 = pneg %p119
    // Predicated region
    $region9: #{encoder_block_forward.4} parent=5 // pred_check
      _
    $region10: #{encoder_block_forward.4} parent=5 // pred_check_branch
      %122 = sbr.rel (%p119) target = $region12
    $region11: #{encoder_block_forward.4} parent=5 // pred_region
      %s123 = ssub.s32 %s10, 1
      // Predicated region
      $region13: #{encoder_block_forward.4} parent=11 // pred_check
        %p124 = pneg %p57
      $region14: #{encoder_block_forward.4} parent=11 // pred_check_branch
        %126 = sbr.rel (%p124) target = $region16
      $region15: #{encoder_block_forward.4} parent=11 // pred_region
        _
      $region16: #{encoder_block_forward.4} parent=11 // pred_fallthru
        _
    $region12: #{encoder_block_forward.4} parent=5 // pred_fallthru
      _
    %p127 = scmp.lt.s32.totalorder %s10, 2
    // Predicated region
    $region17: #{encoder_block_forward.4} parent=5 // pred_check
      %p128 = pneg %p127
    $region18: #{encoder_block_forward.4} parent=5 // pred_check_branch
      %130 = sbr.rel (%p128) target = $region20
    $region19: #{encoder_block_forward.4} parent=5 // pred_region
      // Predicated region
      $region21: #{encoder_block_forward.4} parent=19 // pred_check
        %p131 = pneg %p30
      $region22: #{encoder_block_forward.4} parent=19 // pred_check_branch
        %133 = sbr.rel (%p131) target = $region24
      $region23: #{encoder_block_forward.4} parent=19 // pred_region
        %s134 = smul.u32 32, %s10
        %p135 = scmp.lt.s32.totalorder %s134, 63
        %s136 = scalar_select %p135, %s134, 63
        %s137 = smul.addr %s136, 4
        %s138 = scalar_lea.vmem %s0, %s137
        %s139 = smul.u32 32, %s10
      $region24: #{encoder_block_forward.4} parent=19 // pred_fallthru
        _
    $region20: #{encoder_block_forward.4} parent=5 // pred_fallthru
      _
    %p140 = scmp.le.s32.totalorder 1, %s10
    %p141 = scmp.lt.s32.totalorder %s10, 3
    %p142 = pnand %p140, %p141
    %p143 = pneg %p142
    // Predicated region
    $region25: #{encoder_block_forward.4} parent=5 // pred_check
      _
    $region26: #{encoder_block_forward.4} parent=5 // pred_check_branch
      %145 = sbr.rel (%p142) target = $region28
    $region27: #{encoder_block_forward.4} parent=5 // pred_region
      %s146 = ssub.s32 %s10, 1
      %s147 = smul.u32 32, %s15
      %p148 = scmp.lt.s32.totalorder %s147, 63
      %s149 = scalar_select %p148, %s147, 63
      %s150 = smul.addr %s149, 4
      %s151 = scalar_lea.vmem %s0, %s150
      %p152 = pneg %p36
      %p153 = pneg %p33
      %p154 = pneg %p57
      %p155 = pneg %p54
      %p156 = pneg %p83
      %p157 = pneg %p80
      %s158 = smul.u32 32, %s15
      %p159 = scmp.lt.s32.totalorder %s158, 63
      %s160 = scalar_select %p159, %s158, 63
      %s161 = smul.addr %s160, 8
      %s162 = scalar_lea.vmem %s2, %s161
      %p163 = pneg %p109
      %p164 = pneg %p106
      %p165 = scmp.lt.s32.totalorder %s15, 1
      %s166 = scalar_select %p165, %s15, 1
      %s167 = smul.addr %s166, 2
      %s168 = scalar_lea.vmem %s3, %s167
      %s169 = smul.u32 32, %s15
      %p170 = scmp.lt.s32.totalorder %s169, 63
      %s171 = scalar_select %p170, %s169, 63
      %s172 = smul.addr %s171, 4
      %s173 = scalar_lea.vmem %s0, %s172
      %s174 = smul.u32 32, %s15
      %s175 = smul.u32 32, %s15
      %p176 = scmp.lt.s32.totalorder %s175, 63
      %s177 = scalar_select %p176, %s175, 63
      %s178 = smul.addr %s177, 8
      %s179 = scalar_lea.vmem %s2, %s178
      %s180 = smul.u32 32, %s15
      %p181 = scmp.lt.s32.totalorder %s15, 1
      %s182 = scalar_select %p181, %s15, 1
      %s183 = smul.addr %s182, 2
      %s184 = scalar_lea.vmem %s3, %s183
      %v186 = vld [vmem:[%s173] sm:$0xf]
      %v187 = vld [vmem:[%s173 + $0x4] sm:$0xf]
      %v188 = vld [vmem:[%s173 + $0x8] sm:$0xf]
      %v189 = vld [vmem:[%s173 + $0xc] sm:$0xf]
      %v190 = vld [vmem:[%s173 + $0x10] sm:$0xf]
      %v191 = vld [vmem:[%s173 + $0x14] sm:$0xf]
      %v192 = vld [vmem:[%s173 + $0x18] sm:$0xf]
      %v193 = vld [vmem:[%s173 + $0x1c] sm:$0xf]
      %v194 = vld [vmem:[%s173 + $0x20] sm:$0xf]
      %v195 = vld [vmem:[%s173 + $0x24] sm:$0xf]
      %v196 = vld [vmem:[%s173 + $0x28] sm:$0xf]
      %v197 = vld [vmem:[%s173 + $0x2c] sm:$0xf]
      %v198 = vld [vmem:[%s173 + $0x30] sm:$0xf]
      %v199 = vld [vmem:[%s173 + $0x34] sm:$0xf]
      %v200 = vld [vmem:[%s173 + $0x38] sm:$0xf]
      %v201 = vld [vmem:[%s173 + $0x3c] sm:$0xf]
      %v202 = vld [vmem:[%s173 + $0x40] sm:$0xf]
      %v203 = vld [vmem:[%s173 + $0x44] sm:$0xf]
      %v204 = vld [vmem:[%s173 + $0x48] sm:$0xf]
      %v205 = vld [vmem:[%s173 + $0x4c] sm:$0xf]
      %v206 = vld [vmem:[%s173 + $0x50] sm:$0xf]
      %v207 = vld [vmem:[%s173 + $0x54] sm:$0xf]
      %v208 = vld [vmem:[%s173 + $0x58] sm:$0xf]
      %v209 = vld [vmem:[%s173 + $0x5c] sm:$0xf]
      %v210 = vld [vmem:[%s173 + $0x60] sm:$0xf]
      %v211 = vld [vmem:[%s173 + $0x64] sm:$0xf]
      %v212 = vld [vmem:[%s173 + $0x68] sm:$0xf]
      %v213 = vld [vmem:[%s173 + $0x6c] sm:$0xf]
      %v214 = vld [vmem:[%s173 + $0x70] sm:$0xf]
      %v215 = vld [vmem:[%s173 + $0x74] sm:$0xf]
      %v216 = vld [vmem:[%s173 + $0x78] sm:$0xf]
      %v217 = vld [vmem:[%s173 + $0x7c] sm:$0xf]
      %v218 = vld [vmem:[%s1] sm:$0xf]
      %v219 = vld [vmem:[%s1 + $0x4] sm:$0xf]
      %v220 = vld [vmem:[%s1 + $0x8] sm:$0xf]
      %v221 = vld [vmem:[%s1 + $0xc] sm:$0xf]
      %v222 = vld [vmem:[%s1 + $0x10] sm:$0xf]
      %v223 = vld [vmem:[%s1 + $0x14] sm:$0xf]
      %v256 = vunpack.c.l.b16 %v186
      %v257 = vunpack.c.l.b16 %v187
      %v258 = vunpack.c.l.b16 %v188
      %v259 = vunpack.c.l.b16 %v189
      %v260 = vunpack.c.l.b16 %v190
      %v261 = vunpack.c.l.b16 %v191
      %v262 = vunpack.c.l.b16 %v192
      %v263 = vunpack.c.l.b16 %v193
      %v264 = vunpack.c.l.b16 %v194
      %v265 = vunpack.c.l.b16 %v195
      %v266 = vunpack.c.l.b16 %v196
      %v267 = vunpack.c.l.b16 %v197
      %v268 = vunpack.c.l.b16 %v198
      %v269 = vunpack.c.l.b16 %v199
      %v270 = vunpack.c.l.b16 %v200
      %v271 = vunpack.c.l.b16 %v201
      %v272 = vunpack.c.l.b16 %v202
      %v273 = vunpack.c.l.b16 %v203
      %v274 = vunpack.c.l.b16 %v204
      %v275 = vunpack.c.l.b16 %v205
      %v276 = vunpack.c.l.b16 %v206
      %v277 = vunpack.c.l.b16 %v207
      %v278 = vunpack.c.l.b16 %v208
      %v279 = vunpack.c.l.b16 %v209
      %v280 = vunpack.c.l.b16 %v210
      %v281 = vunpack.c.l.b16 %v211
      %v282 = vunpack.c.l.b16 %v212
      %v283 = vunpack.c.l.b16 %v213
      %v284 = vunpack.c.l.b16 %v214
      %v285 = vunpack.c.l.b16 %v215
      %v286 = vunpack.c.l.b16 %v216
      %v287 = vunpack.c.l.b16 %v217
      %v288 = vpack.c.b16 %v257, %v256
      %v289 = vpack.c.b16 %v259, %v258
      %v290 = vpack.c.b16 %v261, %v260
      %v291 = vpack.c.b16 %v263, %v262
      %v292 = vpack.c.b16 %v265, %v264
      %v293 = vpack.c.b16 %v267, %v266
      %v294 = vpack.c.b16 %v269, %v268
      %v295 = vpack.c.b16 %v271, %v270
      %v296 = vpack.c.b16 %v273, %v272
      %v297 = vpack.c.b16 %v275, %v274
      %v298 = vpack.c.b16 %v277, %v276
      %v299 = vpack.c.b16 %v279, %v278
      %v300 = vpack.c.b16 %v281, %v280
      %v301 = vpack.c.b16 %v283, %v282
      %v302 = vpack.c.b16 %v285, %v284
      %v303 = vpack.c.b16 %v287, %v286
      %v310 = vunpack.c.l.b16 %v218
      %v311 = vunpack.c.l.b16 %v219
      %v312 = vunpack.c.l.b16 %v220
      %v313 = vunpack.c.l.b16 %v221
      %v314 = vunpack.c.l.b16 %v222
      %v315 = vunpack.c.l.b16 %v223
      %v316 = vpack.c.b16 %v311, %v310
      %v317 = vpack.c.b16 %v313, %v312
      %v318 = vpack.c.b16 %v315, %v314
      %vm322 = vcmask 392192
      %v324 = vsel %vm322, %v288, 0
      %v327 = vsel %vm322, %v289, 0
      %v330 = vsel %vm322, %v290, 0
      %v333 = vsel %vm322, %v291, 0
      %v336 = vsel %vm322, %v292, 0
      %v339 = vsel %vm322, %v293, 0
      %v342 = vsel %vm322, %v294, 0
      %v345 = vsel %vm322, %v295, 0
      %v348 = vsel %vm322, %v296, 0
      %v351 = vsel %vm322, %v297, 0
      %v354 = vsel %vm322, %v298, 0
      %v357 = vsel %vm322, %v299, 0
      %v360 = vsel %vm322, %v300, 0
      %v363 = vsel %vm322, %v301, 0
      %v366 = vsel %vm322, %v302, 0
      %v369 = vsel %vm322, %v303, 0
      %371 = vmatprep.subr.bf16.mxu0 0
      %372 = vmatpush1.bf16.msra.mxu0 %v316
      %373 = vmatprep.subr.bf16.mxu0 0
      %374 = vmatpush1.bf16.msra.mxu0 %v317
      %375 = vmatprep.subr.bf16.mxu0 0
      %376 = vmatpush1.bf16.msra.mxu0 %v318
      %377 = vmatprep.subr.bf16.mxu0 0
      %378 = vmatpush1.bf16.msra.mxu0 0
      %379 = vmatprep.subr.bf16.mxu0 0
      %380 = vmatpush1.bf16.msra.mxu0 0
      %381 = vmatprep.subr.bf16.mxu0 0
      %382 = vmatpush1.bf16.msra.mxu0 0
      %383 = vmatprep.subr.bf16.mxu0 0
      %384 = vmatpush1.bf16.msra.mxu0 0
      %385 = vmatprep.subr.bf16.mxu0 0
      %386 = vmatpush1.bf16.msra.mxu0 0
      %387 = vmatprep.subr.bf16.mxu0 0
      %388 = vmatpush1.bf16.msra.mxu0 0
      %389 = vmatprep.subr.bf16.mxu0 0
      %390 = vmatpush1.bf16.msra.mxu0 0
      %391 = vmatprep.subr.bf16.mxu0 0
      %392 = vmatpush1.bf16.msra.mxu0 0
      %393 = vmatprep.subr.bf16.mxu0 0
      %394 = vmatpush1.bf16.msra.mxu0 0
      %395 = vmatprep.subr.bf16.mxu0 0
      %396 = vmatpush1.bf16.msra.mxu0 0
      %397 = vmatprep.subr.bf16.mxu0 0
      %398 = vmatpush1.bf16.msra.mxu0 0
      %399 = vmatprep.subr.bf16.mxu0 0
      %400 = vmatpush1.bf16.msra.mxu0 0
      %401 = vmatprep.subr.bf16.mxu0 0
      %402 = vmatpush1.bf16.msra.mxu0 0
      %403 = vmatprep.mubr.bf16.mxu0 0
      %404 = vmatmul.mubr.bf16.gmra.mrb[0].mxu0 %v324
      %v405 = vpop.f32.mrb[0].mxu0
      %v406 = vadd.f32 0.0, %v405
      %v407 = vpop.f32.mrb[0].mxu0
      %v408 = vpop.f32.mrb[0].mxu0
      %v409 = vadd.f32 0.0, %v408
      %v410 = vpop.f32.mrb[0].mxu0
      %411 = vmatprep.mubr.bf16.mxu0 0
      %412 = vmatmul.mubr.bf16.gmra.mrb[0].mxu0 %v327
      %v413 = vpop.f32.mrb[0].mxu0
      %v414 = vadd.f32 0.0, %v413
      %v415 = vpop.f32.mrb[0].mxu0
      %v416 = vpop.f32.mrb[0].mxu0
      %v417 = vadd.f32 0.0, %v416
      %v418 = vpop.f32.mrb[0].mxu0
      %419 = vmatprep.mubr.bf16.mxu0 0
      %420 = vmatmul.mubr.bf16.gmra.mrb[0].mxu0 %v330
      %v421 = vpop.f32.mrb[0].mxu0
      %v422 = vadd.f32 0.0, %v421
      %v423 = vpop.f32.mrb[0].mxu0
      %v424 = vpop.f32.mrb[0].mxu0
      %v425 = vadd.f32 0.0, %v424
      %v426 = vpop.f32.mrb[0].mxu0
      %427 = vmatprep.mubr.bf16.mxu0 0
      %428 = vmatmul.mubr.bf16.gmra.mrb[0].mxu0 %v333
      %v429 = vpop.f32.mrb[0].mxu0
      %v430 = vadd.f32 0.0, %v429
      %v431 = vpop.f32.mrb[0].mxu0
      %v432 = vpop.f32.mrb[0].mxu0
      %v433 = vadd.f32 0.0, %v432
      %v434 = vpop.f32.mrb[0].mxu0
      %435 = vmatprep.mubr.bf16.mxu0 0
      %436 = vmatmul.mubr.bf16.gmra.mrb[0].mxu0 %v336
      %v437 = vpop.f32.mrb[0].mxu0
      %v438 = vadd.f32 0.0, %v437
      %v439 = vpop.f32.mrb[0].mxu0
      %v440 = vpop.f32.mrb[0].mxu0
      %v441 = vadd.f32 0.0, %v440
      %v442 = vpop.f32.mrb[0].mxu0
      %443 = vmatprep.mubr.bf16.mxu0 0
      %444 = vmatmul.mubr.bf16.gmra.mrb[0].mxu0 %v339
      %v445 = vpop.f32.mrb[0].mxu0
      %v446 = vadd.f32 0.0, %v445
      %v447 = vpop.f32.mrb[0].mxu0
      %v448 = vpop.f32.mrb[0].mxu0
      %v449 = vadd.f32 0.0, %v448
      %v450 = vpop.f32.mrb[0].mxu0
      %451 = vmatprep.mubr.bf16.mxu0 0
      %452 = vmatmul.mubr.bf16.gmra.mrb[0].mxu0 %v342
      %v453 = vpop.f32.mrb[0].mxu0
      %v454 = vadd.f32 0.0, %v453
      %v455 = vpop.f32.mrb[0].mxu0
      %v456 = vpop.f32.mrb[0].mxu0
      %v457 = vadd.f32 0.0, %v456
      %v458 = vpop.f32.mrb[0].mxu0
      %459 = vmatprep.mubr.bf16.mxu0 0
      %460 = vmatmul.mubr.bf16.gmra.mrb[0].mxu0 %v345
      %v461 = vpop.f32.mrb[0].mxu0
      %v462 = vadd.f32 0.0, %v461
      %v463 = vpop.f32.mrb[0].mxu0
      %v464 = vpop.f32.mrb[0].mxu0
      %v465 = vadd.f32 0.0, %v464
      %v466 = vpop.f32.mrb[0].mxu0
      %467 = vmatprep.mubr.bf16.mxu0 0
      %468 = vmatmul.mubr.bf16.gmra.mrb[0].mxu0 %v348
      %v469 = vpop.f32.mrb[0].mxu0
      %v470 = vadd.f32 0.0, %v469
      %v471 = vpop.f32.mrb[0].mxu0
      %v472 = vpop.f32.mrb[0].mxu0
      %v473 = vadd.f32 0.0, %v472
      %v474 = vpop.f32.mrb[0].mxu0
      %475 = vmatprep.mubr.bf16.mxu0 0
      %476 = vmatmul.mubr.bf16.gmra.mrb[0].mxu0 %v351
      %v477 = vpop.f32.mrb[0].mxu0
      %v478 = vadd.f32 0.0, %v477
      %v479 = vpop.f32.mrb[0].mxu0
      %v480 = vpop.f32.mrb[0].mxu0
      %v481 = vadd.f32 0.0, %v480
      %v482 = vpop.f32.mrb[0].mxu0
      %483 = vmatprep.mubr.bf16.mxu0 0
      %484 = vmatmul.mubr.bf16.gmra.mrb[0].mxu0 %v354
      %v485 = vpop.f32.mrb[0].mxu0
      %v486 = vadd.f32 0.0, %v485
      %v487 = vpop.f32.mrb[0].mxu0
      %v488 = vpop.f32.mrb[0].mxu0
      %v489 = vadd.f32 0.0, %v488
      %v490 = vpop.f32.mrb[0].mxu0
      %491 = vmatprep.mubr.bf16.mxu0 0
      %492 = vmatmul.mubr.bf16.gmra.mrb[0].mxu0 %v357
      %v493 = vpop.f32.mrb[0].mxu0
      %v494 = vadd.f32 0.0, %v493
      %v495 = vpop.f32.mrb[0].mxu0
      %v496 = vpop.f32.mrb[0].mxu0
      %v497 = vadd.f32 0.0, %v496
      %v498 = vpop.f32.mrb[0].mxu0
      %499 = vmatprep.mubr.bf16.mxu0 0
      %500 = vmatmul.mubr.bf16.gmra.mrb[0].mxu0 %v360
      %v501 = vpop.f32.mrb[0].mxu0
      %v502 = vadd.f32 0.0, %v501
      %v503 = vpop.f32.mrb[0].mxu0
      %v504 = vpop.f32.mrb[0].mxu0
      %v505 = vadd.f32 0.0, %v504
      %v506 = vpop.f32.mrb[0].mxu0
      %507 = vmatprep.mubr.bf16.mxu0 0
      %508 = vmatmul.mubr.bf16.gmra.mrb[0].mxu0 %v363
      %v509 = vpop.f32.mrb[0].mxu0
      %v510 = vadd.f32 0.0, %v509
      %v511 = vpop.f32.mrb[0].mxu0
      %v512 = vpop.f32.mrb[0].mxu0
      %v513 = vadd.f32 0.0, %v512
      %v514 = vpop.f32.mrb[0].mxu0
      %515 = vmatprep.mubr.bf16.mxu0 0
      %516 = vmatmul.mubr.bf16.gmra.mrb[0].mxu0 %v366
      %v517 = vpop.f32.mrb[0].mxu0
      %v518 = vadd.f32 0.0, %v517
      %v519 = vpop.f32.mrb[0].mxu0
      %v520 = vpop.f32.mrb[0].mxu0
      %v521 = vadd.f32 0.0, %v520
      %v522 = vpop.f32.mrb[0].mxu0
      %523 = vmatprep.mubr.bf16.mxu0 0
      %524 = vmatmul.mubr.bf16.gmra.mrb[0].mxu0 %v369
      %v525 = vpop.f32.mrb[0].mxu0
      %v526 = vadd.f32 0.0, %v525
      %v527 = vpop.f32.mrb[0].mxu0
      %v528 = vpop.f32.mrb[0].mxu0
      %v529 = vadd.f32 0.0, %v528
      %v530 = vpop.f32.mrb[0].mxu0
      %531 = vdwg.mxu0
      %532 = vst [vmem:[%s179] sm:$0xff] %v406
      %533 = vst [vmem:[%s179 + $0x8] sm:$0xff] %v409
      %534 = vst [vmem:[%s179 + $0x10] sm:$0xff] %v414
      %535 = vst [vmem:[%s179 + $0x18] sm:$0xff] %v417
      %536 = vst [vmem:[%s179 + $0x20] sm:$0xff] %v422
      %537 = vst [vmem:[%s179 + $0x28] sm:$0xff] %v425
      %538 = vst [vmem:[%s179 + $0x30] sm:$0xff] %v430
      %539 = vst [vmem:[%s179 + $0x38] sm:$0xff] %v433
      %540 = vst [vmem:[%s179 + $0x40] sm:$0xff] %v438
      %541 = vst [vmem:[%s179 + $0x48] sm:$0xff] %v441
      %542 = vst [vmem:[%s179 + $0x50] sm:$0xff] %v446
      %543 = vst [vmem:[%s179 + $0x58] sm:$0xff] %v449
      %544 = vst [vmem:[%s179 + $0x60] sm:$0xff] %v454
      %545 = vst [vmem:[%s179 + $0x68] sm:$0xff] %v457
      %546 = vst [vmem:[%s179 + $0x70] sm:$0xff] %v462
      %547 = vst [vmem:[%s179 + $0x78] sm:$0xff] %v465
      %548 = vst [vmem:[%s179 + $0x80] sm:$0xff] %v470
      %549 = vst [vmem:[%s179 + $0x88] sm:$0xff] %v473
      %550 = vst [vmem:[%s179 + $0x90] sm:$0xff] %v478
      %551 = vst [vmem:[%s179 + $0x98] sm:$0xff] %v481
      %552 = vst [vmem:[%s179 + $0xa0] sm:$0xff] %v486
      %553 = vst [vmem:[%s179 + $0xa8] sm:$0xff] %v489
      %554 = vst [vmem:[%s179 + $0xb0] sm:$0xff] %v494
      %555 = vst [vmem:[%s179 + $0xb8] sm:$0xff] %v497
      %556 = vst [vmem:[%s179 + $0xc0] sm:$0xff] %v502
      %557 = vst [vmem:[%s179 + $0xc8] sm:$0xff] %v505
      %558 = vst [vmem:[%s179 + $0xd0] sm:$0xff] %v510
      %559 = vst [vmem:[%s179 + $0xd8] sm:$0xff] %v513
      %560 = vst [vmem:[%s179 + $0xe0] sm:$0xff] %v518
      %561 = vst [vmem:[%s179 + $0xe8] sm:$0xff] %v521
      %562 = vst [vmem:[%s179 + $0xf0] sm:$0xff] %v526
      %563 = vst [vmem:[%s179 + $0xf8] sm:$0xff] %v529
      %v564 = vadd.f32 %v406, %v409
      %v565 = vadd.f32 %v564, %v414
      %v566 = vadd.f32 %v565, %v417
      %v567 = vadd.f32 %v566, %v422
      %v568 = vadd.f32 %v567, %v425
      %v569 = vadd.f32 %v568, %v430
      %v570 = vadd.f32 %v569, %v433
      %v571 = vadd.f32 %v570, %v438
      %v572 = vadd.f32 %v571, %v441
      %v573 = vadd.f32 %v572, %v446
      %v574 = vadd.f32 %v573, %v449
      %v575 = vadd.f32 %v574, %v454
      %v576 = vadd.f32 %v575, %v457
      %v577 = vadd.f32 %v576, %v462
      %v578 = vadd.f32 %v577, %v465
      %v579 = vadd.f32 %v578, %v470
      %v580 = vadd.f32 %v579, %v473
      %v581 = vadd.f32 %v580, %v478
      %v582 = vadd.f32 %v581, %v481
      %v583 = vadd.f32 %v582, %v486
      %v584 = vadd.f32 %v583, %v489
      %v585 = vadd.f32 %v584, %v494
      %v586 = vadd.f32 %v585, %v497
      %v587 = vadd.f32 %v586, %v502
      %v588 = vadd.f32 %v587, %v505
      %v589 = vadd.f32 %v588, %v510
      %v590 = vadd.f32 %v589, %v513
      %v591 = vadd.f32 %v590, %v518
      %v592 = vadd.f32 %v591, %v521
      %v593 = vadd.f32 %v592, %v526
      %v594 = vadd.f32 %v593, %v529
      %v595 = vrot.slane %v594, 4
      %v596 = vadd.f32 %v594, %v595
      %v597 = vrot.slane %v596, 2
      %v598 = vadd.f32 %v596, %v597
      %v599 = vrot.slane %v598, 1
      %v600 = vadd.f32 %v598, %v599
      %v601 = vmul.f32 %v406, %v406
      %v602 = vmul.f32 %v409, %v409
      %v603 = vmul.f32 %v414, %v414
      %v604 = vmul.f32 %v417, %v417
      %v605 = vmul.f32 %v422, %v422
      %v606 = vmul.f32 %v425, %v425
      %v607 = vmul.f32 %v430, %v430
      %v608 = vmul.f32 %v433, %v433
      %v609 = vmul.f32 %v438, %v438
      %v610 = vmul.f32 %v441, %v441
      %v611 = vmul.f32 %v446, %v446
      %v612 = vmul.f32 %v449, %v449
      %v613 = vmul.f32 %v454, %v454
      %v614 = vmul.f32 %v457, %v457
      %v615 = vmul.f32 %v462, %v462
      %v616 = vmul.f32 %v465, %v465
      %v617 = vmul.f32 %v470, %v470
      %v618 = vmul.f32 %v473, %v473
      %v619 = vmul.f32 %v478, %v478
      %v620 = vmul.f32 %v481, %v481
      %v621 = vmul.f32 %v486, %v486
      %v622 = vmul.f32 %v489, %v489
      %v623 = vmul.f32 %v494, %v494
      %v624 = vmul.f32 %v497, %v497
      %v625 = vmul.f32 %v502, %v502
      %v626 = vmul.f32 %v505, %v505
      %v627 = vmul.f32 %v510, %v510
      %v628 = vmul.f32 %v513, %v513
      %v629 = vmul.f32 %v518, %v518
      %v630 = vmul.f32 %v521, %v521
      %v631 = vmul.f32 %v526, %v526
      %v632 = vmul.f32 %v529, %v529
      %v633 = vadd.f32 %v601, %v602
      %v634 = vadd.f32 %v633, %v603
      %v635 = vadd.f32 %v634, %v604
      %v636 = vadd.f32 %v635, %v605
      %v637 = vadd.f32 %v636, %v606
      %v638 = vadd.f32 %v637, %v607
      %v639 = vadd.f32 %v638, %v608
      %v640 = vadd.f32 %v639, %v609
      %v641 = vadd.f32 %v640, %v610
      %v642 = vadd.f32 %v641, %v611
      %v643 = vadd.f32 %v642, %v612
      %v644 = vadd.f32 %v643, %v613
      %v645 = vadd.f32 %v644, %v614
      %v646 = vadd.f32 %v645, %v615
      %v647 = vadd.f32 %v646, %v616
      %v648 = vadd.f32 %v647, %v617
      %v649 = vadd.f32 %v648, %v618
      %v650 = vadd.f32 %v649, %v619
      %v651 = vadd.f32 %v650, %v620
      %v652 = vadd.f32 %v651, %v621
      %v653 = vadd.f32 %v652, %v622
      %v654 = vadd.f32 %v653, %v623
      %v655 = vadd.f32 %v654, %v624
      %v656 = vadd.f32 %v655, %v625
      %v657 = vadd.f32 %v656, %v626
      %v658 = vadd.f32 %v657, %v627
      %v659 = vadd.f32 %v658, %v628
      %v660 = vadd.f32 %v659, %v629
      %v661 = vadd.f32 %v660, %v630
      %v662 = vadd.f32 %v661, %v631
      %v663 = vadd.f32 %v662, %v632
      %v664 = vrot.slane %v663, 4
      %v665 = vadd.f32 %v663, %v664
      %v666 = vrot.slane %v665, 2
      %v667 = vadd.f32 %v665, %v666
      %v668 = vrot.slane %v667, 1
      %v669 = vadd.f32 %v667, %v668
      %vm670 = vcmask 1040384
      %v671 = vsel %vm670, %v600, %v669
      %672 = vst [vmem:[%s184] sm:$0x3] %v671
      %s673 = smul.u32 32, %s15
      %p674 = scmp.lt.s32.totalorder %s673, 63
      %s675 = scalar_select %p674, %s673, 63
      %s676 = smul.addr %s675, 8
      %s677 = scalar_lea.vmem %s2, %s676
      %p678 = scmp.lt.s32.totalorder %s15, 1
      %s679 = scalar_select %p678, %s15, 1
      %s680 = smul.addr %s679, 2
      %s681 = scalar_lea.vmem %s3, %s680
      // Predicated region
      $region29: #{encoder_block_forward.4} parent=27 // pred_check
        %p682 = pneg %p80
      $region30: #{encoder_block_forward.4} parent=27 // pred_check_branch
        %684 = sbr.rel (%p682) target = $region32
      $region31: #{encoder_block_forward.4} parent=27 // pred_region
        %s685 = smul.u32 32, %s15
      $region32: #{encoder_block_forward.4} parent=27 // pred_fallthru
        _
      // Predicated region
      $region33: #{encoder_block_forward.4} parent=27 // pred_check
        %p686 = pneg %p106
      $region34: #{encoder_block_forward.4} parent=27 // pred_check_branch
        %688 = sbr.rel (%p686) target = $region36
      $region35: #{encoder_block_forward.4} parent=27 // pred_region
        _
      $region36: #{encoder_block_forward.4} parent=27 // pred_fallthru
        _
    $region28: #{encoder_block_forward.4} parent=5 // pred_fallthru
      _
    %p689 = scmp.le.s32.totalorder 2, %s10
    // Predicated region
    $region37: #{encoder_block_forward.4} parent=5 // pred_check
      %p690 = pneg %p689
    $region38: #{encoder_block_forward.4} parent=5 // pred_check_branch
      %692 = sbr.rel (%p690) target = $region40
    $region39: #{encoder_block_forward.4} parent=5 // pred_region
      %s693 = ssub.s32 %s10, 2
      // Predicated region
      $region41: #{encoder_block_forward.4} parent=39 // pred_check
        %p694 = pneg %p86
      $region42: #{encoder_block_forward.4} parent=39 // pred_check_branch
        %696 = sbr.rel (%p694) target = $region44
      $region43: #{encoder_block_forward.4} parent=39 // pred_region
        %s697 = smul.u32 32, %s16
        %p698 = scmp.lt.s32.totalorder %s697, 63
        %s699 = scalar_select %p698, %s697, 63
        %s700 = smul.addr %s699, 8
        %s701 = scalar_lea.vmem %s2, %s700
      $region44: #{encoder_block_forward.4} parent=39 // pred_fallthru
        _
      // Predicated region
      $region45: #{encoder_block_forward.4} parent=39 // pred_check
        %p702 = pneg %p112
      $region46: #{encoder_block_forward.4} parent=39 // pred_check_branch
        %704 = sbr.rel (%p702) target = $region48
      $region47: #{encoder_block_forward.4} parent=39 // pred_region
        %p705 = scmp.lt.s32.totalorder %s16, 1
        %s706 = scalar_select %p705, %s16, 1
        %s707 = smul.addr %s706, 2
        %s708 = scalar_lea.vmem %s3, %s707
      $region48: #{encoder_block_forward.4} parent=39 // pred_fallthru
        _
    $region40: #{encoder_block_forward.4} parent=5 // pred_fallthru
      _
  $region6: #{encoder_block_forward.4} parent=0 // loop_footer
    %s14 = sadd.s32 1, %s10
  $region7: #{encoder_block_forward.4} parent=0 // loop_footer_branch
    %9 = sbr.rel target = $region3
  $region8: #{encoder_block_forward.4} parent=0 // loop_exit
    _

// kernel: encoder_block_forward.6
$region0: #{encoder_block_forward.6}
  #allocation0 [shape = 'u32[]', space=smem, size = 0x4, offset = 0x4, fixed_abs, tag = 'smem constant byte address 0x4 - core index']
  #allocation1 [shape = 'u32[144,128]{1,0:T(1,128)}', space=vmem, size = 0x12000, scoped, tag = 'internal scratch']
  %s0 = inlined_call_operand.vmem [shape: bf16[512,80], index: 0, kind: input, shape index: {}]
  %s1 = inlined_call_operand.vmem [shape: bf16[80,128], index: 1, kind: input, shape index: {}]
  %s2 = inlined_call_operand.vmem [shape: f32[512,128], index: 2, kind: output, shape index: {0}]
  %s3 = inlined_call_operand.vmem [shape: f32[2,2,128], index: 3, kind: output, shape index: {1}]
  %4 = xla_tuple %s2, %s3
  %s5 = sld [smem:[#allocation0]]
  $region49: #{encoder_block_forward.6} parent=0
    _
  %s7 = ssub.s32 1, %s5
  %s8 = scalar_select 0, %s7, %s5
  loop: start=0, step=1, limit=4
  $region2: #{encoder_block_forward.6} parent=0 // loop_pre_header
    _
  $region3: #{encoder_block_forward.6} parent=0 // loop_header
    %s10 = sphi 0, %s14
    %p11 = scmp.ge.s32.totalorder %s10, 4
    %s20 = sphi 0, %s22
    %s23 = sphi 0, %s20
    %s24 = sphi 0, %s23
    %s40 = sphi 0, %s24
    %s44 = sphi 0, %s44
    %s46 = sphi 0, %s44
    %s47 = sphi 0, %s46
    %s61 = sphi 0, %s47
    %s67 = sphi 0, %s69
    %s70 = sphi 0, %s67
    %s71 = sphi 0, %s70
    %s87 = sphi 0, %s71
    %s93 = sphi 0, %s95
    %s96 = sphi 0, %s93
    %s97 = sphi 0, %s96
    %s113 = sphi 0, %s97
  $region4: #{encoder_block_forward.6} parent=0 // loop_header_branch
    %13 = sbr.rel (%p11) target = $region8
  $region5: #{encoder_block_forward.6} parent=0 // loop_body
    %s15 = ssub.s32 %s10, 1
    %s16 = ssub.s32 %s10, 2
    %s17 = sadd.s32 %s10, 1
    %s18 = ssub.s32 %s10, %s17
    %p19 = scmp.eq.s32.totalorder %s18, 0
    %s21 = sadd.s32 %s20, 1
    %s22 = scalar_select %p19, %s20, %s21
    %p25 = pneg %p19
    %p26 = scmp.eq.s32.totalorder %s10, 1
    %p27 = por %p25, %p26
    %p28 = scmp.ne.s32.totalorder %s20, %s23
    %p29 = scmp.eq.s32.totalorder %s10, 0
    %p30 = por %p28, %p29
    %p31 = scmp.ne.s32.totalorder %s20, %s23
    %p32 = scmp.eq.s32.totalorder %s15, 1
    %p33 = por %p31, %p32
    %p34 = scmp.ne.s32.totalorder %s23, %s24
    %p35 = scmp.eq.s32.totalorder %s15, 0
    %p36 = por %p34, %p35
    %p37 = scmp.ne.s32.totalorder %s23, %s24
    %p38 = scmp.eq.s32.totalorder %s16, 1
    %p39 = por %p37, %p38
    %p41 = scmp.ne.s32.totalorder %s24, %s40
    %p42 = scmp.eq.s32.totalorder %s16, 0
    %p43 = por %p41, %p42
    %s45 = sadd.s32 %s44, 1
    %p48 = scmp.eq.s32.totalorder %s10, 1
    %p49 = scmp.ne.s32.totalorder %s44, %s46
    %p50 = scmp.eq.s32.totalorder %s10, 0
    %p51 = por %p49, %p50
    %p52 = scmp.ne.s32.totalorder %s44, %s46
    %p53 = scmp.eq.s32.totalorder %s15, 1
    %p54 = por %p52, %p53
    %p55 = scmp.ne.s32.totalorder %s46, %s47
    %p56 = scmp.eq.s32.totalorder %s15, 0
    %p57 = por %p55, %p56
    %p58 = scmp.ne.s32.totalorder %s46, %s47
    %p59 = scmp.eq.s32.totalorder %s16, 1
    %p60 = por %p58, %p59
    %p62 = scmp.ne.s32.totalorder %s47, %s61
    %p63 = scmp.eq.s32.totalorder %s16, 0
    %p64 = por %p62, %p63
    %s65 = ssub.s32 %s10, %s17
    %p66 = scmp.eq.s32.totalorder %s65, 0
    %s68 = sadd.s32 %s67, 1
    %s69 = scalar_select %p66, %s67, %s68
    %p72 = pneg %p66
    %p73 = scmp.eq.s32.totalorder %s10, 1
    %p74 = por %p72, %p73
    %p75 = scmp.ne.s32.totalorder %s67, %s70
    %p76 = scmp.eq.s32.totalorder %s10, 0
    %p77 = por %p75, %p76
    %p78 = scmp.ne.s32.totalorder %s67, %s70
    %p79 = scmp.eq.s32.totalorder %s15, 1
    %p80 = por %p78, %p79
    %p81 = scmp.ne.s32.totalorder %s70, %s71
    %p82 = scmp.eq.s32.totalorder %s15, 0
    %p83 = por %p81, %p82
    %p84 = scmp.ne.s32.totalorder %s70, %s71
    %p85 = scmp.eq.s32.totalorder %s16, 1
    %p86 = por %p84, %p85
    %p88 = scmp.ne.s32.totalorder %s71, %s87
    %p89 = scmp.eq.s32.totalorder %s16, 0
    %p90 = por %p88, %p89
    %s91 = ssub.s32 %s10, %s17
    %p92 = scmp.eq.s32.totalorder %s91, 0
    %s94 = sadd.s32 %s93, 1
    %s95 = scalar_select %p92, %s93, %s94
    %p98 = pneg %p92
    %p99 = scmp.eq.s32.totalorder %s10, 1
    %p100 = por %p98, %p99
    %p101 = scmp.ne.s32.totalorder %s93, %s96
    %p102 = scmp.eq.s32.totalorder %s10, 0
    %p103 = por %p101, %p102
    %p104 = scmp.ne.s32.totalorder %s93, %s96
    %p105 = scmp.eq.s32.totalorder %s15, 1
    %p106 = por %p104, %p105
    %p107 = scmp.ne.s32.totalorder %s96, %s97
    %p108 = scmp.eq.s32.totalorder %s15, 0
    %p109 = por %p107, %p108
    %p110 = scmp.ne.s32.totalorder %s96, %s97
    %p111 = scmp.eq.s32.totalorder %s16, 1
    %p112 = por %p110, %p111
    %p114 = scmp.ne.s32.totalorder %s97, %s113
    %p115 = scmp.eq.s32.totalorder %s16, 0
    %p116 = por %p114, %p115
    %p117 = scmp.le.s32.totalorder 1, %s10
    %p118 = scmp.lt.s32.totalorder %s10, 3
    %p119 = pnand %p117, %p118
    %p120 = pneg %p119
    // Predicated region
    $region9: #{encoder_block_forward.6} parent=5 // pred_check
      _
    $region10: #{encoder_block_forward.6} parent=5 // pred_check_branch
      %122 = sbr.rel (%p119) target = $region12
    $region11: #{encoder_block_forward.6} parent=5 // pred_region
      %s123 = ssub.s32 %s10, 1
      // Predicated region
      $region13: #{encoder_block_forward.6} parent=11 // pred_check
        %p124 = pneg %p57
      $region14: #{encoder_block_forward.6} parent=11 // pred_check_branch
        %126 = sbr.rel (%p124) target = $region16
      $region15: #{encoder_block_forward.6} parent=11 // pred_region
        _
      $region16: #{encoder_block_forward.6} parent=11 // pred_fallthru
        _
    $region12: #{encoder_block_forward.6} parent=5 // pred_fallthru
      _
    %p127 = scmp.lt.s32.totalorder %s10, 2
    // Predicated region
    $region17: #{encoder_block_forward.6} parent=5 // pred_check
      %p128 = pneg %p127
    $region18: #{encoder_block_forward.6} parent=5 // pred_check_branch
      %130 = sbr.rel (%p128) target = $region20
    $region19: #{encoder_block_forward.6} parent=5 // pred_region
      // Predicated region
      $region21: #{encoder_block_forward.6} parent=19 // pred_check
        %p131 = pneg %p30
      $region22: #{encoder_block_forward.6} parent=19 // pred_check_branch
        %133 = sbr.rel (%p131) target = $region24
      $region23: #{encoder_block_forward.6} parent=19 // pred_region
        %s134 = smul.u32 32, %s10
        %p135 = scmp.lt.s32.totalorder %s134, 63
        %s136 = scalar_select %p135, %s134, 63
        %s137 = smul.addr %s136, 4
        %s138 = scalar_lea.vmem %s0, %s137
        %s139 = smul.u32 32, %s10
      $region24: #{encoder_block_forward.6} parent=19 // pred_fallthru
        _
    $region20: #{encoder_block_forward.6} parent=5 // pred_fallthru
      _
    %p140 = scmp.le.s32.totalorder 1, %s10
    %p141 = scmp.lt.s32.totalorder %s10, 3
    %p142 = pnand %p140, %p141
    %p143 = pneg %p142
    // Predicated region
    $region25: #{encoder_block_forward.6} parent=5 // pred_check
      _
    $region26: #{encoder_block_forward.6} parent=5 // pred_check_branch
      %145 = sbr.rel (%p142) target = $region28
    $region27: #{encoder_block_forward.6} parent=5 // pred_region
      %s146 = ssub.s32 %s10, 1
      %s147 = smul.u32 32, %s15
      %p148 = scmp.lt.s32.totalorder %s147, 63
      %s149 = scalar_select %p148, %s147, 63
      %s150 = smul.addr %s149, 4
      %s151 = scalar_lea.vmem %s0, %s150
      %p152 = pneg %p36
      %p153 = pneg %p33
      %p154 = pneg %p57
      %p155 = pneg %p54
      %p156 = pneg %p83
      %p157 = pneg %p80
      %s158 = smul.u32 32, %s15
      %p159 = scmp.lt.s32.totalorder %s158, 63
      %s160 = scalar_select %p159, %s158, 63
      %s161 = smul.addr %s160, 8
      %s162 = scalar_lea.vmem %s2, %s161
      %p163 = pneg %p109
      %p164 = pneg %p106
      %p165 = scmp.lt.s32.totalorder %s15, 1
      %s166 = scalar_select %p165, %s15, 1
      %s167 = smul.addr %s166, 2
      %s168 = scalar_lea.vmem %s3, %s167
      %s169 = smul.u32 32, %s15
      %p170 = scmp.lt.s32.totalorder %s169, 63
      %s171 = scalar_select %p170, %s169, 63
      %s172 = smul.addr %s171, 4
      %s173 = scalar_lea.vmem %s0, %s172
      %s174 = smul.u32 32, %s15
      %s175 = smul.u32 32, %s15
      %p176 = scmp.lt.s32.totalorder %s175, 63
      %s177 = scalar_select %p176, %s175, 63
      %s178 = smul.addr %s177, 8
      %s179 = scalar_lea.vmem %s2, %s178
      %s180 = smul.u32 32, %s15
      %p181 = scmp.lt.s32.totalorder %s15, 1
      %s182 = scalar_select %p181, %s15, 1
      %s183 = smul.addr %s182, 2
      %s184 = scalar_lea.vmem %s3, %s183
      %v186 = vld [vmem:[%s173] sm:$0xf]
      %v187 = vld [vmem:[%s173 + $0x4] sm:$0xf]
      %v188 = vld [vmem:[%s173 + $0x8] sm:$0xf]
      %v189 = vld [vmem:[%s173 + $0xc] sm:$0xf]
      %v190 = vld [vmem:[%s173 + $0x10] sm:$0xf]
      %v191 = vld [vmem:[%s173 + $0x14] sm:$0xf]
      %v192 = vld [vmem:[%s173 + $0x18] sm:$0xf]
      %v193 = vld [vmem:[%s173 + $0x1c] sm:$0xf]
      %v194 = vld [vmem:[%s173 + $0x20] sm:$0xf]
      %v195 = vld [vmem:[%s173 + $0x24] sm:$0xf]
      %v196 = vld [vmem:[%s173 + $0x28] sm:$0xf]
      %v197 = vld [vmem:[%s173 + $0x2c] sm:$0xf]
      %v198 = vld [vmem:[%s173 + $0x30] sm:$0xf]
      %v199 = vld [vmem:[%s173 + $0x34] sm:$0xf]
      %v200 = vld [vmem:[%s173 + $0x38] sm:$0xf]
      %v201 = vld [vmem:[%s173 + $0x3c] sm:$0xf]
      %v202 = vld [vmem:[%s173 + $0x40] sm:$0xf]
      %v203 = vld [vmem:[%s173 + $0x44] sm:$0xf]
      %v204 = vld [vmem:[%s173 + $0x48] sm:$0xf]
      %v205 = vld [vmem:[%s173 + $0x4c] sm:$0xf]
      %v206 = vld [vmem:[%s173 + $0x50] sm:$0xf]
      %v207 = vld [vmem:[%s173 + $0x54] sm:$0xf]
      %v208 = vld [vmem:[%s173 + $0x58] sm:$0xf]
      %v209 = vld [vmem:[%s173 + $0x5c] sm:$0xf]
      %v210 = vld [vmem:[%s173 + $0x60] sm:$0xf]
      %v211 = vld [vmem:[%s173 + $0x64] sm:$0xf]
      %v212 = vld [vmem:[%s173 + $0x68] sm:$0xf]
      %v213 = vld [vmem:[%s173 + $0x6c] sm:$0xf]
      %v214 = vld [vmem:[%s173 + $0x70] sm:$0xf]
      %v215 = vld [vmem:[%s173 + $0x74] sm:$0xf]
      %v216 = vld [vmem:[%s173 + $0x78] sm:$0xf]
      %v217 = vld [vmem:[%s173 + $0x7c] sm:$0xf]
      %v218 = vld [vmem:[%s1] sm:$0xf]
      %v219 = vld [vmem:[%s1 + $0x4] sm:$0xf]
      %v220 = vld [vmem:[%s1 + $0x8] sm:$0xf]
      %v221 = vld [vmem:[%s1 + $0xc] sm:$0xf]
      %v222 = vld [vmem:[%s1 + $0x10] sm:$0xf]
      %v223 = vld [vmem:[%s1 + $0x14] sm:$0xf]
      %v224 = vld [vmem:[%s1 + $0x18] sm:$0xf]
      %v225 = vld [vmem:[%s1 + $0x1c] sm:$0xf]
      %v226 = vld [vmem:[%s1 + $0x20] sm:$0xf]
      %v227 = vld [vmem:[%s1 + $0x24] sm:$0xf]
      %v260 = vunpack.c.l.b16 %v186
      %v261 = vunpack.c.l.b16 %v187
      %v262 = vunpack.c.l.b16 %v188
      %v263 = vunpack.c.l.b16 %v189
      %v264 = vunpack.c.l.b16 %v190
      %v265 = vunpack.c.l.b16 %v191
      %v266 = vunpack.c.l.b16 %v192
      %v267 = vunpack.c.l.b16 %v193
      %v268 = vunpack.c.l.b16 %v194
      %v269 = vunpack.c.l.b16 %v195
      %v270 = vunpack.c.l.b16 %v196
      %v271 = vunpack.c.l.b16 %v197
      %v272 = vunpack.c.l.b16 %v198
      %v273 = vunpack.c.l.b16 %v199
      %v274 = vunpack.c.l.b16 %v200
      %v275 = vunpack.c.l.b16 %v201
      %v276 = vunpack.c.l.b16 %v202
      %v277 = vunpack.c.l.b16 %v203
      %v278 = vunpack.c.l.b16 %v204
      %v279 = vunpack.c.l.b16 %v205
      %v280 = vunpack.c.l.b16 %v206
      %v281 = vunpack.c.l.b16 %v207
      %v282 = vunpack.c.l.b16 %v208
      %v283 = vunpack.c.l.b16 %v209
      %v284 = vunpack.c.l.b16 %v210
      %v285 = vunpack.c.l.b16 %v211
      %v286 = vunpack.c.l.b16 %v212
      %v287 = vunpack.c.l.b16 %v213
      %v288 = vunpack.c.l.b16 %v214
      %v289 = vunpack.c.l.b16 %v215
      %v290 = vunpack.c.l.b16 %v216
      %v291 = vunpack.c.l.b16 %v217
      %v292 = vpack.c.b16 %v261, %v260
      %v293 = vpack.c.b16 %v263, %v262
      %v294 = vpack.c.b16 %v265, %v264
      %v295 = vpack.c.b16 %v267, %v266
      %v296 = vpack.c.b16 %v269, %v268
      %v297 = vpack.c.b16 %v271, %v270
      %v298 = vpack.c.b16 %v273, %v272
      %v299 = vpack.c.b16 %v275, %v274
      %v300 = vpack.c.b16 %v277, %v276
      %v301 = vpack.c.b16 %v279, %v278
      %v302 = vpack.c.b16 %v281, %v280
      %v303 = vpack.c.b16 %v283, %v282
      %v304 = vpack.c.b16 %v285, %v284
      %v305 = vpack.c.b16 %v287, %v286
      %v306 = vpack.c.b16 %v289, %v288
      %v307 = vpack.c.b16 %v291, %v290
      %v318 = vunpack.c.l.b16 %v218
      %v319 = vunpack.c.l.b16 %v219
      %v320 = vunpack.c.l.b16 %v220
      %v321 = vunpack.c.l.b16 %v221
      %v322 = vunpack.c.l.b16 %v222
      %v323 = vunpack.c.l.b16 %v223
      %v324 = vunpack.c.l.b16 %v224
      %v325 = vunpack.c.l.b16 %v225
      %v326 = vunpack.c.l.b16 %v226
      %v327 = vunpack.c.l.b16 %v227
      %v328 = vpack.c.b16 %v319, %v318
      %v329 = vpack.c.b16 %v321, %v320
      %v330 = vpack.c.b16 %v323, %v322
      %v331 = vpack.c.b16 %v325, %v324
      %v332 = vpack.c.b16 %v327, %v326
      %vm338 = vcmask 654336
      %v340 = vsel %vm338, %v292, 0
      %v343 = vsel %vm338, %v293, 0
      %v346 = vsel %vm338, %v294, 0
      %v349 = vsel %vm338, %v295, 0
      %v352 = vsel %vm338, %v296, 0
      %v355 = vsel %vm338, %v297, 0
      %v358 = vsel %vm338, %v298, 0
      %v361 = vsel %vm338, %v299, 0
      %v364 = vsel %vm338, %v300, 0
      %v367 = vsel %vm338, %v301, 0
      %v370 = vsel %vm338, %v302, 0
      %v373 = vsel %vm338, %v303, 0
      %v376 = vsel %vm338, %v304, 0
      %v379 = vsel %vm338, %v305, 0
      %v382 = vsel %vm338, %v306, 0
      %v385 = vsel %vm338, %v307, 0
      %387 = vmatprep.subr.bf16.mxu0 0
      %388 = vmatpush1.bf16.msra.mxu0 %v328
      %389 = vmatprep.subr.bf16.mxu0 0
      %390 = vmatpush1.bf16.msra.mxu0 %v329
      %391 = vmatprep.subr.bf16.mxu0 0
      %392 = vmatpush1.bf16.msra.mxu0 %v330
      %393 = vmatprep.subr.bf16.mxu0 0
      %394 = vmatpush1.bf16.msra.mxu0 %v331
      %395 = vmatprep.subr.bf16.mxu0 0
      %396 = vmatpush1.bf16.msra.mxu0 %v332
      %397 = vmatprep.subr.bf16.mxu0 0
      %398 = vmatpush1.bf16.msra.mxu0 0
      %399 = vmatprep.subr.bf16.mxu0 0
      %400 = vmatpush1.bf16.msra.mxu0 0
      %401 = vmatprep.subr.bf16.mxu0 0
      %402 = vmatpush1.bf16.msra.mxu0 0
      %403 = vmatprep.subr.bf16.mxu0 0
      %404 = vmatpush1.bf16.msra.mxu0 0
      %405 = vmatprep.subr.bf16.mxu0 0
      %406 = vmatpush1.bf16.msra.mxu0 0
      %407 = vmatprep.subr.bf16.mxu0 0
      %408 = vmatpush1.bf16.msra.mxu0 0
      %409 = vmatprep.subr.bf16.mxu0 0
      %410 = vmatpush1.bf16.msra.mxu0 0
      %411 = vmatprep.subr.bf16.mxu0 0
      %412 = vmatpush1.bf16.msra.mxu0 0
      %413 = vmatprep.subr.bf16.mxu0 0
      %414 = vmatpush1.bf16.msra.mxu0 0
      %415 = vmatprep.subr.bf16.mxu0 0
      %416 = vmatpush1.bf16.msra.mxu0 0
      %417 = vmatprep.subr.bf16.mxu0 0
      %418 = vmatpush1.bf16.msra.mxu0 0
      %419 = vmatprep.mubr.bf16.mxu0 0
      %420 = vmatmul.mubr.bf16.gmra.mrb[0].mxu0 %v340
      %v421 = vpop.f32.mrb[0].mxu0
      %v422 = vadd.f32 0.0, %v421
      %v423 = vpop.f32.mrb[0].mxu0
      %v424 = vpop.f32.mrb[0].mxu0
      %v425 = vadd.f32 0.0, %v424
      %v426 = vpop.f32.mrb[0].mxu0
      %427 = vmatprep.mubr.bf16.mxu0 0
      %428 = vmatmul.mubr.bf16.gmra.mrb[0].mxu0 %v343
      %v429 = vpop.f32.mrb[0].mxu0
      %v430 = vadd.f32 0.0, %v429
      %v431 = vpop.f32.mrb[0].mxu0
      %v432 = vpop.f32.mrb[0].mxu0
      %v433 = vadd.f32 0.0, %v432
      %v434 = vpop.f32.mrb[0].mxu0
      %435 = vmatprep.mubr.bf16.mxu0 0
      %436 = vmatmul.mubr.bf16.gmra.mrb[0].mxu0 %v346
      %v437 = vpop.f32.mrb[0].mxu0
      %v438 = vadd.f32 0.0, %v437
      %v439 = vpop.f32.mrb[0].mxu0
      %v440 = vpop.f32.mrb[0].mxu0
      %v441 = vadd.f32 0.0, %v440
      %v442 = vpop.f32.mrb[0].mxu0
      %443 = vmatprep.mubr.bf16.mxu0 0
      %444 = vmatmul.mubr.bf16.gmra.mrb[0].mxu0 %v349
      %v445 = vpop.f32.mrb[0].mxu0
      %v446 = vadd.f32 0.0, %v445
      %v447 = vpop.f32.mrb[0].mxu0
      %v448 = vpop.f32.mrb[0].mxu0
      %v449 = vadd.f32 0.0, %v448
      %v450 = vpop.f32.mrb[0].mxu0
      %451 = vmatprep.mubr.bf16.mxu0 0
      %452 = vmatmul.mubr.bf16.gmra.mrb[0].mxu0 %v352
      %v453 = vpop.f32.mrb[0].mxu0
      %v454 = vadd.f32 0.0, %v453
      %v455 = vpop.f32.mrb[0].mxu0
      %v456 = vpop.f32.mrb[0].mxu0
      %v457 = vadd.f32 0.0, %v456
      %v458 = vpop.f32.mrb[0].mxu0
      %459 = vmatprep.mubr.bf16.mxu0 0
      %460 = vmatmul.mubr.bf16.gmra.mrb[0].mxu0 %v355
      %v461 = vpop.f32.mrb[0].mxu0
      %v462 = vadd.f32 0.0, %v461
      %v463 = vpop.f32.mrb[0].mxu0
      %v464 = vpop.f32.mrb[0].mxu0
      %v465 = vadd.f32 0.0, %v464
      %v466 = vpop.f32.mrb[0].mxu0
      %467 = vmatprep.mubr.bf16.mxu0 0
      %468 = vmatmul.mubr.bf16.gmra.mrb[0].mxu0 %v358
      %v469 = vpop.f32.mrb[0].mxu0
      %v470 = vadd.f32 0.0, %v469
      %v471 = vpop.f32.mrb[0].mxu0
      %v472 = vpop.f32.mrb[0].mxu0
      %v473 = vadd.f32 0.0, %v472
      %v474 = vpop.f32.mrb[0].mxu0
      %475 = vmatprep.mubr.bf16.mxu0 0
      %476 = vmatmul.mubr.bf16.gmra.mrb[0].mxu0 %v361
      %v477 = vpop.f32.mrb[0].mxu0
      %v478 = vadd.f32 0.0, %v477
      %v479 = vpop.f32.mrb[0].mxu0
      %v480 = vpop.f32.mrb[0].mxu0
      %v481 = vadd.f32 0.0, %v480
      %v482 = vpop.f32.mrb[0].mxu0
      %483 = vmatprep.mubr.bf16.mxu0 0
      %484 = vmatmul.mubr.bf16.gmra.mrb[0].mxu0 %v364
      %v485 = vpop.f32.mrb[0].mxu0
      %v486 = vadd.f32 0.0, %v485
      %v487 = vpop.f32.mrb[0].mxu0
      %v488 = vpop.f32.mrb[0].mxu0
      %v489 = vadd.f32 0.0, %v488
      %v490 = vpop.f32.mrb[0].mxu0
      %491 = vmatprep.mubr.bf16.mxu0 0
      %492 = vmatmul.mubr.bf16.gmra.mrb[0].mxu0 %v367
      %v493 = vpop.f32.mrb[0].mxu0
      %v494 = vadd.f32 0.0, %v493
      %v495 = vpop.f32.mrb[0].mxu0
      %v496 = vpop.f32.mrb[0].mxu0
      %v497 = vadd.f32 0.0, %v496
      %v498 = vpop.f32.mrb[0].mxu0
      %499 = vmatprep.mubr.bf16.mxu0 0
      %500 = vmatmul.mubr.bf16.gmra.mrb[0].mxu0 %v370
      %v501 = vpop.f32.mrb[0].mxu0
      %v502 = vadd.f32 0.0, %v501
      %v503 = vpop.f32.mrb[0].mxu0
      %v504 = vpop.f32.mrb[0].mxu0
      %v505 = vadd.f32 0.0, %v504
      %v506 = vpop.f32.mrb[0].mxu0
      %507 = vmatprep.mubr.bf16.mxu0 0
      %508 = vmatmul.mubr.bf16.gmra.mrb[0].mxu0 %v373
      %v509 = vpop.f32.mrb[0].mxu0
      %v510 = vadd.f32 0.0, %v509
      %v511 = vpop.f32.mrb[0].mxu0
      %v512 = vpop.f32.mrb[0].mxu0
      %v513 = vadd.f32 0.0, %v512
      %v514 = vpop.f32.mrb[0].mxu0
      %515 = vmatprep.mubr.bf16.mxu0 0
      %516 = vmatmul.mubr.bf16.gmra.mrb[0].mxu0 %v376
      %v517 = vpop.f32.mrb[0].mxu0
      %v518 = vadd.f32 0.0, %v517
      %v519 = vpop.f32.mrb[0].mxu0
      %v520 = vpop.f32.mrb[0].mxu0
      %v521 = vadd.f32 0.0, %v520
      %v522 = vpop.f32.mrb[0].mxu0
      %523 = vmatprep.mubr.bf16.mxu0 0
      %524 = vmatmul.mubr.bf16.gmra.mrb[0].mxu0 %v379
      %v525 = vpop.f32.mrb[0].mxu0
      %v526 = vadd.f32 0.0, %v525
      %v527 = vpop.f32.mrb[0].mxu0
      %v528 = vpop.f32.mrb[0].mxu0
      %v529 = vadd.f32 0.0, %v528
      %v530 = vpop.f32.mrb[0].mxu0
      %531 = vmatprep.mubr.bf16.mxu0 0
      %532 = vmatmul.mubr.bf16.gmra.mrb[0].mxu0 %v382
      %v533 = vpop.f32.mrb[0].mxu0
      %v534 = vadd.f32 0.0, %v533
      %v535 = vpop.f32.mrb[0].mxu0
      %v536 = vpop.f32.mrb[0].mxu0
      %v537 = vadd.f32 0.0, %v536
      %v538 = vpop.f32.mrb[0].mxu0
      %539 = vmatprep.mubr.bf16.mxu0 0
      %540 = vmatmul.mubr.bf16.gmra.mrb[0].mxu0 %v385
      %v541 = vpop.f32.mrb[0].mxu0
      %v542 = vadd.f32 0.0, %v541
      %v543 = vpop.f32.mrb[0].mxu0
      %v544 = vpop.f32.mrb[0].mxu0
      %v545 = vadd.f32 0.0, %v544
      %v546 = vpop.f32.mrb[0].mxu0
      %547 = vdwg.mxu0
      %548 = vst [vmem:[%s179] sm:$0xff] %v422
      %549 = vst [vmem:[%s179 + $0x8] sm:$0xff] %v425
      %550 = vst [vmem:[%s179 + $0x10] sm:$0xff] %v430
      %551 = vst [vmem:[%s179 + $0x18] sm:$0xff] %v433
      %552 = vst [vmem:[%s179 + $0x20] sm:$0xff] %v438
      %553 = vst [vmem:[%s179 + $0x28] sm:$0xff] %v441
      %554 = vst [vmem:[%s179 + $0x30] sm:$0xff] %v446
      %555 = vst [vmem:[%s179 + $0x38] sm:$0xff] %v449
      %556 = vst [vmem:[%s179 + $0x40] sm:$0xff] %v454
      %557 = vst [vmem:[%s179 + $0x48] sm:$0xff] %v457
      %558 = vst [vmem:[%s179 + $0x50] sm:$0xff] %v462
      %559 = vst [vmem:[%s179 + $0x58] sm:$0xff] %v465
      %560 = vst [vmem:[%s179 + $0x60] sm:$0xff] %v470
      %561 = vst [vmem:[%s179 + $0x68] sm:$0xff] %v473
      %562 = vst [vmem:[%s179 + $0x70] sm:$0xff] %v478
      %563 = vst [vmem:[%s179 + $0x78] sm:$0xff] %v481
      %564 = vst [vmem:[%s179 + $0x80] sm:$0xff] %v486
      %565 = vst [vmem:[%s179 + $0x88] sm:$0xff] %v489
      %566 = vst [vmem:[%s179 + $0x90] sm:$0xff] %v494
      %567 = vst [vmem:[%s179 + $0x98] sm:$0xff] %v497
      %568 = vst [vmem:[%s179 + $0xa0] sm:$0xff] %v502
      %569 = vst [vmem:[%s179 + $0xa8] sm:$0xff] %v505
      %570 = vst [vmem:[%s179 + $0xb0] sm:$0xff] %v510
      %571 = vst [vmem:[%s179 + $0xb8] sm:$0xff] %v513
      %572 = vst [vmem:[%s179 + $0xc0] sm:$0xff] %v518
      %573 = vst [vmem:[%s179 + $0xc8] sm:$0xff] %v521
      %574 = vst [vmem:[%s179 + $0xd0] sm:$0xff] %v526
      %575 = vst [vmem:[%s179 + $0xd8] sm:$0xff] %v529
      %576 = vst [vmem:[%s179 + $0xe0] sm:$0xff] %v534
      %577 = vst [vmem:[%s179 + $0xe8] sm:$0xff] %v537
      %578 = vst [vmem:[%s179 + $0xf0] sm:$0xff] %v542
      %579 = vst [vmem:[%s179 + $0xf8] sm:$0xff] %v545
      %v580 = vadd.f32 %v422, %v425
      %v581 = vadd.f32 %v580, %v430
      %v582 = vadd.f32 %v581, %v433
      %v583 = vadd.f32 %v582, %v438
      %v584 = vadd.f32 %v583, %v441
      %v585 = vadd.f32 %v584, %v446
      %v586 = vadd.f32 %v585, %v449
      %v587 = vadd.f32 %v586, %v454
      %v588 = vadd.f32 %v587, %v457
      %v589 = vadd.f32 %v588, %v462
      %v590 = vadd.f32 %v589, %v465
      %v591 = vadd.f32 %v590, %v470
      %v592 = vadd.f32 %v591, %v473
      %v593 = vadd.f32 %v592, %v478
      %v594 = vadd.f32 %v593, %v481
      %v595 = vadd.f32 %v594, %v486
      %v596 = vadd.f32 %v595, %v489
      %v597 = vadd.f32 %v596, %v494
      %v598 = vadd.f32 %v597, %v497
      %v599 = vadd.f32 %v598, %v502
      %v600 = vadd.f32 %v599, %v505
      %v601 = vadd.f32 %v600, %v510
      %v602 = vadd.f32 %v601, %v513
      %v603 = vadd.f32 %v602, %v518
      %v604 = vadd.f32 %v603, %v521
      %v605 = vadd.f32 %v604, %v526
      %v606 = vadd.f32 %v605, %v529
      %v607 = vadd.f32 %v606, %v534
      %v608 = vadd.f32 %v607, %v537
      %v609 = vadd.f32 %v608, %v542
      %v610 = vadd.f32 %v609, %v545
      %v611 = vrot.slane %v610, 4
      %v612 = vadd.f32 %v610, %v611
      %v613 = vrot.slane %v612, 2
      %v614 = vadd.f32 %v612, %v613
      %v615 = vrot.slane %v614, 1
      %v616 = vadd.f32 %v614, %v615
      %v617 = vmul.f32 %v422, %v422
      %v618 = vmul.f32 %v425, %v425
      %v619 = vmul.f32 %v430, %v430
      %v620 = vmul.f32 %v433, %v433
      %v621 = vmul.f32 %v438, %v438
      %v622 = vmul.f32 %v441, %v441
      %v623 = vmul.f32 %v446, %v446
      %v624 = vmul.f32 %v449, %v449
      %v625 = vmul.f32 %v454, %v454
      %v626 = vmul.f32 %v457, %v457
      %v627 = vmul.f32 %v462, %v462
      %v628 = vmul.f32 %v465, %v465
      %v629 = vmul.f32 %v470, %v470
      %v630 = vmul.f32 %v473, %v473
      %v631 = vmul.f32 %v478, %v478
      %v632 = vmul.f32 %v481, %v481
      %v633 = vmul.f32 %v486, %v486
      %v634 = vmul.f32 %v489, %v489
      %v635 = vmul.f32 %v494, %v494
      %v636 = vmul.f32 %v497, %v497
      %v637 = vmul.f32 %v502, %v502
      %v638 = vmul.f32 %v505, %v505
      %v639 = vmul.f32 %v510, %v510
      %v640 = vmul.f32 %v513, %v513
      %v641 = vmul.f32 %v518, %v518
      %v642 = vmul.f32 %v521, %v521
      %v643 = vmul.f32 %v526, %v526
      %v644 = vmul.f32 %v529, %v529
      %v645 = vmul.f32 %v534, %v534
      %v646 = vmul.f32 %v537, %v537
      %v647 = vmul.f32 %v542, %v542
      %v648 = vmul.f32 %v545, %v545
      %v649 = vadd.f32 %v617, %v618
      %v650 = vadd.f32 %v649, %v619
      %v651 = vadd.f32 %v650, %v620
      %v652 = vadd.f32 %v651, %v621
      %v653 = vadd.f32 %v652, %v622
      %v654 = vadd.f32 %v653, %v623
      %v655 = vadd.f32 %v654, %v624
      %v656 = vadd.f32 %v655, %v625
      %v657 = vadd.f32 %v656, %v626
      %v658 = vadd.f32 %v657, %v627
      %v659 = vadd.f32 %v658, %v628
      %v660 = vadd.f32 %v659, %v629
      %v661 = vadd.f32 %v660, %v630
      %v662 = vadd.f32 %v661, %v631
      %v663 = vadd.f32 %v662, %v632
      %v664 = vadd.f32 %v663, %v633
      %v665 = vadd.f32 %v664, %v634
      %v666 = vadd.f32 %v665, %v635
      %v667 = vadd.f32 %v666, %v636
      %v668 = vadd.f32 %v667, %v637
      %v669 = vadd.f32 %v668, %v638
      %v670 = vadd.f32 %v669, %v639
      %v671 = vadd.f32 %v670, %v640
      %v672 = vadd.f32 %v671, %v641
      %v673 = vadd.f32 %v672, %v642
      %v674 = vadd.f32 %v673, %v643
      %v675 = vadd.f32 %v674, %v644
      %v676 = vadd.f32 %v675, %v645
      %v677 = vadd.f32 %v676, %v646
      %v678 = vadd.f32 %v677, %v647
      %v679 = vadd.f32 %v678, %v648
      %v680 = vrot.slane %v679, 4
      %v681 = vadd.f32 %v679, %v680
      %v682 = vrot.slane %v681, 2
      %v683 = vadd.f32 %v681, %v682
      %v684 = vrot.slane %v683, 1
      %v685 = vadd.f32 %v683, %v684
      %vm686 = vcmask 1040384
      %v687 = vsel %vm686, %v616, %v685
      %688 = vst [vmem:[%s184] sm:$0x3] %v687
      %s689 = smul.u32 32, %s15
      %p690 = scmp.lt.s32.totalorder %s689, 63
      %s691 = scalar_select %p690, %s689, 63
      %s692 = smul.addr %s691, 8
      %s693 = scalar_lea.vmem %s2, %s692
      %p694 = scmp.lt.s32.totalorder %s15, 1
      %s695 = scalar_select %p694, %s15, 1
      %s696 = smul.addr %s695, 2
      %s697 = scalar_lea.vmem %s3, %s696
      // Predicated region
      $region29: #{encoder_block_forward.6} parent=27 // pred_check
        %p698 = pneg %p80
      $region30: #{encoder_block_forward.6} parent=27 // pred_check_branch
        %700 = sbr.rel (%p698) target = $region32
      $region31: #{encoder_block_forward.6} parent=27 // pred_region
        %s701 = smul.u32 32, %s15
      $region32: #{encoder_block_forward.6} parent=27 // pred_fallthru
        _
      // Predicated region
      $region33: #{encoder_block_forward.6} parent=27 // pred_check
        %p702 = pneg %p106
      $region34: #{encoder_block_forward.6} parent=27 // pred_check_branch
        %704 = sbr.rel (%p702) target = $region36
      $region35: #{encoder_block_forward.6} parent=27 // pred_region
        _
      $region36: #{encoder_block_forward.6} parent=27 // pred_fallthru
        _
    $region28: #{encoder_block_forward.6} parent=5 // pred_fallthru
      _
    %p705 = scmp.le.s32.totalorder 2, %s10
    // Predicated region
    $region37: #{encoder_block_forward.6} parent=5 // pred_check
      %p706 = pneg %p705
    $region38: #{encoder_block_forward.6} parent=5 // pred_check_branch
      %708 = sbr.rel (%p706) target = $region40
    $region39: #{encoder_block_forward.6} parent=5 // pred_region
      %s709 = ssub.s32 %s10, 2
      // Predicated region
      $region41: #{encoder_block_forward.6} parent=39 // pred_check
        %p710 = pneg %p86
      $region42: #{encoder_block_forward.6} parent=39 // pred_check_branch
        %712 = sbr.rel (%p710) target = $region44
      $region43: #{encoder_block_forward.6} parent=39 // pred_region
        %s713 = smul.u32 32, %s16
        %p714 = scmp.lt.s32.totalorder %s713, 63
        %s715 = scalar_select %p714, %s713, 63
        %s716 = smul.addr %s715, 8
        %s717 = scalar_lea.vmem %s2, %s716
      $region44: #{encoder_block_forward.6} parent=39 // pred_fallthru
        _
      // Predicated region
      $region45: #{encoder_block_forward.6} parent=39 // pred_check
        %p718 = pneg %p112
      $region46: #{encoder_block_forward.6} parent=39 // pred_check_branch
        %720 = sbr.rel (%p718) target = $region48
      $region47: #{encoder_block_forward.6} parent=39 // pred_region
        %p721 = scmp.lt.s32.totalorder %s16, 1
        %s722 = scalar_select %p721, %s16, 1
        %s723 = smul.addr %s722, 2
        %s724 = scalar_lea.vmem %s3, %s723
      $region48: #{encoder_block_forward.6} parent=39 // pred_fallthru
        _
    $region40: #{encoder_block_forward.6} parent=5 // pred_fallthru
      _
  $region6: #{encoder_block_forward.6} parent=0 // loop_footer
    %s14 = sadd.s32 1, %s10
  $region7: #{encoder_block_forward.6} parent=0 // loop_footer_branch
    %9 = sbr.rel target = $region3
  $region8: #{encoder_block_forward.6} parent=0 // loop_exit
    _

// kernel: encoder_block_forward.7
$region0: #{encoder_block_forward.7}
  #allocation0 [shape = 'u32[]', space=smem, size = 0x4, offset = 0x4, fixed_abs, tag = 'smem constant byte address 0x4 - core index']
  #allocation1 [shape = 'u32[144,128]{1,0:T(1,128)}', space=vmem, size = 0x12000, scoped, tag = 'internal scratch']
  %s0 = inlined_call_operand.vmem [shape: f32[512,128], index: 0, kind: input, shape index: {}]
  %s1 = inlined_call_operand.vmem [shape: f32[1,128], index: 1, kind: input, shape index: {}]
  %s2 = inlined_call_operand.vmem [shape: f32[1,128], index: 2, kind: input, shape index: {}]
  %s3 = inlined_call_operand.vmem [shape: f32[512,128], index: 3, kind: output, shape index: {0}]
  %s4 = inlined_call_operand.vmem [shape: f32[128,128], index: 4, kind: output, shape index: {1}]
  %5 = xla_tuple %s3, %s4
  %s6 = sld [smem:[#allocation0]]
  $region53: #{encoder_block_forward.7} parent=0
    _
  %s8 = ssub.s32 1, %s6
  %s9 = scalar_select 0, %s8, %s6
  loop: start=0, step=1, limit=4
  $region2: #{encoder_block_forward.7} parent=0 // loop_pre_header
    _
  $region3: #{encoder_block_forward.7} parent=0 // loop_header
    %s11 = sphi 0, %s15
    %p12 = scmp.ge.s32.totalorder %s11, 4
    %s21 = sphi 0, %s23
    %s24 = sphi 0, %s21
    %s25 = sphi 0, %s24
    %s41 = sphi 0, %s25
    %s45 = sphi 0, %s45
    %s47 = sphi 0, %s45
    %s48 = sphi 0, %s47
    %s62 = sphi 0, %s48
    %s66 = sphi 0, %s66
    %s68 = sphi 0, %s66
    %s69 = sphi 0, %s68
    %s83 = sphi 0, %s69
    %s89 = sphi 0, %s91
    %s92 = sphi 0, %s89
    %s93 = sphi 0, %s92
    %s109 = sphi 0, %s93
    %s115 = sphi 0, %s117
    %s118 = sphi 0, %s115
    %s119 = sphi 0, %s118
    %s135 = sphi 0, %s119
  $region4: #{encoder_block_forward.7} parent=0 // loop_header_branch
    %14 = sbr.rel (%p12) target = $region8
  $region5: #{encoder_block_forward.7} parent=0 // loop_body
    %s16 = ssub.s32 %s11, 1
    %s17 = ssub.s32 %s11, 2
    %s18 = sadd.s32 %s11, 1
    %s19 = ssub.s32 %s11, %s18
    %p20 = scmp.eq.s32.totalorder %s19, 0
    %s22 = sadd.s32 %s21, 1
    %s23 = scalar_select %p20, %s21, %s22
    %p26 = pneg %p20
    %p27 = scmp.eq.s32.totalorder %s11, 1
    %p28 = por %p26, %p27
    %p29 = scmp.ne.s32.totalorder %s21, %s24
    %p30 = scmp.eq.s32.totalorder %s11, 0
    %p31 = por %p29, %p30
    %p32 = scmp.ne.s32.totalorder %s21, %s24
    %p33 = scmp.eq.s32.totalorder %s16, 1
    %p34 = por %p32, %p33
    %p35 = scmp.ne.s32.totalorder %s24, %s25
    %p36 = scmp.eq.s32.totalorder %s16, 0
    %p37 = por %p35, %p36
    %p38 = scmp.ne.s32.totalorder %s24, %s25
    %p39 = scmp.eq.s32.totalorder %s17, 1
    %p40 = por %p38, %p39
    %p42 = scmp.ne.s32.totalorder %s25, %s41
    %p43 = scmp.eq.s32.totalorder %s17, 0
    %p44 = por %p42, %p43
    %s46 = sadd.s32 %s45, 1
    %p49 = scmp.eq.s32.totalorder %s11, 1
    %p50 = scmp.ne.s32.totalorder %s45, %s47
    %p51 = scmp.eq.s32.totalorder %s11, 0
    %p52 = por %p50, %p51
    %p53 = scmp.ne.s32.totalorder %s45, %s47
    %p54 = scmp.eq.s32.totalorder %s16, 1
    %p55 = por %p53, %p54
    %p56 = scmp.ne.s32.totalorder %s47, %s48
    %p57 = scmp.eq.s32.totalorder %s16, 0
    %p58 = por %p56, %p57
    %p59 = scmp.ne.s32.totalorder %s47, %s48
    %p60 = scmp.eq.s32.totalorder %s17, 1
    %p61 = por %p59, %p60
    %p63 = scmp.ne.s32.totalorder %s48, %s62
    %p64 = scmp.eq.s32.totalorder %s17, 0
    %p65 = por %p63, %p64
    %s67 = sadd.s32 %s66, 1
    %p70 = scmp.eq.s32.totalorder %s11, 1
    %p71 = scmp.ne.s32.totalorder %s66, %s68
    %p72 = scmp.eq.s32.totalorder %s11, 0
    %p73 = por %p71, %p72
    %p74 = scmp.ne.s32.totalorder %s66, %s68
    %p75 = scmp.eq.s32.totalorder %s16, 1
    %p76 = por %p74, %p75
    %p77 = scmp.ne.s32.totalorder %s68, %s69
    %p78 = scmp.eq.s32.totalorder %s16, 0
    %p79 = por %p77, %p78
    %p80 = scmp.ne.s32.totalorder %s68, %s69
    %p81 = scmp.eq.s32.totalorder %s17, 1
    %p82 = por %p80, %p81
    %p84 = scmp.ne.s32.totalorder %s69, %s83
    %p85 = scmp.eq.s32.totalorder %s17, 0
    %p86 = por %p84, %p85
    %s87 = ssub.s32 %s11, %s18
    %p88 = scmp.eq.s32.totalorder %s87, 0
    %s90 = sadd.s32 %s89, 1
    %s91 = scalar_select %p88, %s89, %s90
    %p94 = pneg %p88
    %p95 = scmp.eq.s32.totalorder %s11, 1
    %p96 = por %p94, %p95
    %p97 = scmp.ne.s32.totalorder %s89, %s92
    %p98 = scmp.eq.s32.totalorder %s11, 0
    %p99 = por %p97, %p98
    %p100 = scmp.ne.s32.totalorder %s89, %s92
    %p101 = scmp.eq.s32.totalorder %s16, 1
    %p102 = por %p100, %p101
    %p103 = scmp.ne.s32.totalorder %s92, %s93
    %p104 = scmp.eq.s32.totalorder %s16, 0
    %p105 = por %p103, %p104
    %p106 = scmp.ne.s32.totalorder %s92, %s93
    %p107 = scmp.eq.s32.totalorder %s17, 1
    %p108 = por %p106, %p107
    %p110 = scmp.ne.s32.totalorder %s93, %s109
    %p111 = scmp.eq.s32.totalorder %s17, 0
    %p112 = por %p110, %p111
    %s113 = ssub.s32 %s11, %s18
    %p114 = scmp.eq.s32.totalorder %s113, 0
    %s116 = sadd.s32 %s115, 1
    %s117 = scalar_select %p114, %s115, %s116
    %p120 = pneg %p114
    %p121 = scmp.eq.s32.totalorder %s11, 1
    %p122 = por %p120, %p121
    %p123 = scmp.ne.s32.totalorder %s115, %s118
    %p124 = scmp.eq.s32.totalorder %s11, 0
    %p125 = por %p123, %p124
    %p126 = scmp.ne.s32.totalorder %s115, %s118
    %p127 = scmp.eq.s32.totalorder %s16, 1
    %p128 = por %p126, %p127
    %p129 = scmp.ne.s32.totalorder %s118, %s119
    %p130 = scmp.eq.s32.totalorder %s16, 0
    %p131 = por %p129, %p130
    %p132 = scmp.ne.s32.totalorder %s118, %s119
    %p133 = scmp.eq.s32.totalorder %s17, 1
    %p134 = por %p132, %p133
    %p136 = scmp.ne.s32.totalorder %s119, %s135
    %p137 = scmp.eq.s32.totalorder %s17, 0
    %p138 = por %p136, %p137
    %p139 = scmp.le.s32.totalorder 1, %s11
    %p140 = scmp.lt.s32.totalorder %s11, 3
    %p141 = pnand %p139, %p140
    %p142 = pneg %p141
    // Predicated region
    $region9: #{encoder_block_forward.7} parent=5 // pred_check
      _
    $region10: #{encoder_block_forward.7} parent=5 // pred_check_branch
      %144 = sbr.rel (%p141) target = $region12
    $region11: #{encoder_block_forward.7} parent=5 // pred_region
      %s145 = ssub.s32 %s11, 1
      // Predicated region
      $region13: #{encoder_block_forward.7} parent=11 // pred_check
        %p146 = pneg %p58
      $region14: #{encoder_block_forward.7} parent=11 // pred_check_branch
        %148 = sbr.rel (%p146) target = $region16
      $region15: #{encoder_block_forward.7} parent=11 // pred_region
        _
      $region16: #{encoder_block_forward.7} parent=11 // pred_fallthru
        _
      // Predicated region
      $region17: #{encoder_block_forward.7} parent=11 // pred_check
        %p149 = pneg %p79
      $region18: #{encoder_block_forward.7} parent=11 // pred_check_branch
        %151 = sbr.rel (%p149) target = $region20
      $region19: #{encoder_block_forward.7} parent=11 // pred_region
        _
      $region20: #{encoder_block_forward.7} parent=11 // pred_fallthru
        _
    $region12: #{encoder_block_forward.7} parent=5 // pred_fallthru
      _
    %p152 = scmp.lt.s32.totalorder %s11, 2
    // Predicated region
    $region21: #{encoder_block_forward.7} parent=5 // pred_check
      %p153 = pneg %p152
    $region22: #{encoder_block_forward.7} parent=5 // pred_check_branch
      %155 = sbr.rel (%p153) target = $region24
    $region23: #{encoder_block_forward.7} parent=5 // pred_region
      // Predicated region
      $region25: #{encoder_block_forward.7} parent=23 // pred_check
        %p156 = pneg %p31
      $region26: #{encoder_block_forward.7} parent=23 // pred_check_branch
        %158 = sbr.rel (%p156) target = $region28
      $region27: #{encoder_block_forward.7} parent=23 // pred_region
        %s159 = smul.u32 32, %s11
        %p160 = scmp.lt.s32.totalorder %s159, 63
        %s161 = scalar_select %p160, %s159, 63
        %s162 = smul.addr %s161, 8
        %s163 = scalar_lea.vmem %s0, %s162
        %s164 = smul.u32 32, %s11
      $region28: #{encoder_block_forward.7} parent=23 // pred_fallthru
        _
    $region24: #{encoder_block_forward.7} parent=5 // pred_fallthru
      _
    %p165 = scmp.le.s32.totalorder 1, %s11
    %p166 = scmp.lt.s32.totalorder %s11, 3
    %p167 = pnand %p165, %p166
    %p168 = pneg %p167
    // Predicated region
    $region29: #{encoder_block_forward.7} parent=5 // pred_check
      _
    $region30: #{encoder_block_forward.7} parent=5 // pred_check_branch
      %170 = sbr.rel (%p167) target = $region32
    $region31: #{encoder_block_forward.7} parent=5 // pred_region
      %s171 = ssub.s32 %s11, 1
      %s172 = smul.u32 32, %s16
      %p173 = scmp.lt.s32.totalorder %s172, 63
      %s174 = scalar_select %p173, %s172, 63
      %s175 = smul.addr %s174, 8
      %s176 = scalar_lea.vmem %s0, %s175
      %p177 = pneg %p37
      %p178 = pneg %p34
      %p179 = pneg %p58
      %p180 = pneg %p55
      %p181 = pneg %p79
      %p182 = pneg %p76
      %p183 = pneg %p105
      %p184 = pneg %p102
      %s185 = smul.u32 32, %s16
      %p186 = scmp.lt.s32.totalorder %s185, 63
      %s187 = scalar_select %p186, %s185, 63
      %s188 = smul.addr %s187, 8
      %s189 = scalar_lea.vmem %s3, %s188
      %p190 = pneg %p131
      %p191 = pneg %p128
      %s192 = smul.u32 8, %s16
      %p193 = scmp.lt.s32.totalorder %s192, 15
      %s194 = scalar_select %p193, %s192, 15
      %s195 = smul.addr %s194, 8
      %s196 = scalar_lea.vmem %s4, %s195
      %s197 = smul.u32 32, %s16
      %p198 = scmp.lt.s32.totalorder %s197, 63
      %s199 = scalar_select %p198, %s197, 63
      %s200 = smul.addr %s199, 8
      %s201 = scalar_lea.vmem %s0, %s200
      %s202 = smul.u32 32, %s16
      %s203 = smul.u32 32, %s16
      %p204 = scmp.lt.s32.totalorder %s203, 63
      %s205 = scalar_select %p204, %s203, 63
      %s206 = smul.addr %s205, 8
      %s207 = scalar_lea.vmem %s3, %s206
      %s208 = smul.u32 32, %s16
      %s209 = smul.u32 8, %s16
      %p210 = scmp.lt.s32.totalorder %s209, 15
      %s211 = scalar_select %p210, %s209, 15
      %s212 = smul.addr %s211, 8
      %s213 = scalar_lea.vmem %s4, %s212
      %s214 = smul.u32 8, %s16
      %v215 = vld [vmem:[%s1] sm:$0x1]
      %v216 = vld [vmem:[%s2] sm:$0x1]
      %v217 = vld [vmem:[%s201] sm:$0xff]
      %v218 = vld [vmem:[%s201 + $0x8] sm:$0xff]
      %v219 = vld [vmem:[%s201 + $0x10] sm:$0xff]
      %v220 = vld [vmem:[%s201 + $0x18] sm:$0xff]
      %v221 = vld [vmem:[%s201 + $0x20] sm:$0xff]
      %v222 = vld [vmem:[%s201 + $0x28] sm:$0xff]
      %v223 = vld [vmem:[%s201 + $0x30] sm:$0xff]
      %v224 = vld [vmem:[%s201 + $0x38] sm:$0xff]
      %v225 = vld [vmem:[%s201 + $0x40] sm:$0xff]
      %v226 = vld [vmem:[%s201 + $0x48] sm:$0xff]
      %v227 = vld [vmem:[%s201 + $0x50] sm:$0xff]
      %v228 = vld [vmem:[%s201 + $0x58] sm:$0xff]
      %v229 = vld [vmem:[%s201 + $0x60] sm:$0xff]
      %v230 = vld [vmem:[%s201 + $0x68] sm:$0xff]
      %v231 = vld [vmem:[%s201 + $0x70] sm:$0xff]
      %v232 = vld [vmem:[%s201 + $0x78] sm:$0xff]
      %v233 = vld [vmem:[%s201 + $0x80] sm:$0xff]
      %v234 = vld [vmem:[%s201 + $0x88] sm:$0xff]
      %v235 = vld [vmem:[%s201 + $0x90] sm:$0xff]
      %v236 = vld [vmem:[%s201 + $0x98] sm:$0xff]
      %v237 = vld [vmem:[%s201 + $0xa0] sm:$0xff]
      %v238 = vld [vmem:[%s201 + $0xa8] sm:$0xff]
      %v239 = vld [vmem:[%s201 + $0xb0] sm:$0xff]
      %v240 = vld [vmem:[%s201 + $0xb8] sm:$0xff]
      %v241 = vld [vmem:[%s201 + $0xc0] sm:$0xff]
      %v242 = vld [vmem:[%s201 + $0xc8] sm:$0xff]
      %v243 = vld [vmem:[%s201 + $0xd0] sm:$0xff]
      %v244 = vld [vmem:[%s201 + $0xd8] sm:$0xff]
      %v245 = vld [vmem:[%s201 + $0xe0] sm:$0xff]
      %v246 = vld [vmem:[%s201 + $0xe8] sm:$0xff]
      %v247 = vld [vmem:[%s201 + $0xf0] sm:$0xff]
      %v248 = vld [vmem:[%s201 + $0xf8] sm:$0xff]
      %v250 = vlaneseq
      %v251 = vshrl.u32 %v250, 7
      %v252 = vsub.s32 0, %v251
      %v253 = vrot.slane %v215, %v252
      %v255 = vmul.f32 %v217, %v253
      %v256 = vmul.f32 %v218, %v253
      %v257 = vmul.f32 %v219, %v253
      %v258 = vmul.f32 %v220, %v253
      %v259 = vmul.f32 %v221, %v253
      %v260 = vmul.f32 %v222, %v253
      %v261 = vmul.f32 %v223, %v253
      %v262 = vmul.f32 %v224, %v253
      %v263 = vmul.f32 %v225, %v253
      %v264 = vmul.f32 %v226, %v253
      %v265 = vmul.f32 %v227, %v253
      %v266 = vmul.f32 %v228, %v253
      %v267 = vmul.f32 %v229, %v253
      %v268 = vmul.f32 %v230, %v253
      %v269 = vmul.f32 %v231, %v253
      %v270 = vmul.f32 %v232, %v253
      %v271 = vmul.f32 %v233, %v253
      %v272 = vmul.f32 %v234, %v253
      %v273 = vmul.f32 %v235, %v253
      %v274 = vmul.f32 %v236, %v253
      %v275 = vmul.f32 %v237, %v253
      %v276 = vmul.f32 %v238, %v253
      %v277 = vmul.f32 %v239, %v253
      %v278 = vmul.f32 %v240, %v253
      %v279 = vmul.f32 %v241, %v253
      %v280 = vmul.f32 %v242, %v253
      %v281 = vmul.f32 %v243, %v253
      %v282 = vmul.f32 %v244, %v253
      %v283 = vmul.f32 %v245, %v253
      %v284 = vmul.f32 %v246, %v253
      %v285 = vmul.f32 %v247, %v253
      %v286 = vmul.f32 %v248, %v253
      %v288 = vlaneseq
      %v289 = vshrl.u32 %v288, 7
      %v290 = vsub.s32 0, %v289
      %v291 = vrot.slane %v216, %v290
      %v293 = vadd.f32 %v255, %v291
      %v294 = vadd.f32 %v256, %v291
      %v295 = vadd.f32 %v257, %v291
      %v296 = vadd.f32 %v258, %v291
      %v297 = vadd.f32 %v259, %v291
      %v298 = vadd.f32 %v260, %v291
      %v299 = vadd.f32 %v261, %v291
      %v300 = vadd.f32 %v262, %v291
      %v301 = vadd.f32 %v263, %v291
      %v302 = vadd.f32 %v264, %v291
      %v303 = vadd.f32 %v265, %v291
      %v304 = vadd.f32 %v266, %v291
      %v305 = vadd.f32 %v267, %v291
      %v306 = vadd.f32 %v268, %v291
      %v307 = vadd.f32 %v269, %v291
      %v308 = vadd.f32 %v270, %v291
      %v309 = vadd.f32 %v271, %v291
      %v310 = vadd.f32 %v272, %v291
      %v311 = vadd.f32 %v273, %v291
      %v312 = vadd.f32 %v274, %v291
      %v313 = vadd.f32 %v275, %v291
      %v314 = vadd.f32 %v276, %v291
      %v315 = vadd.f32 %v277, %v291
      %v316 = vadd.f32 %v278, %v291
      %v317 = vadd.f32 %v279, %v291
      %v318 = vadd.f32 %v280, %v291
      %v319 = vadd.f32 %v281, %v291
      %v320 = vadd.f32 %v282, %v291
      %v321 = vadd.f32 %v283, %v291
      %v322 = vadd.f32 %v284, %v291
      %v323 = vadd.f32 %v285, %v291
      %v324 = vadd.f32 %v286, %v291
      %v325 = vmax.f32 %v293, 0.0
      %v326 = vmax.f32 %v294, 0.0
      %v327 = vmax.f32 %v295, 0.0
      %v328 = vmax.f32 %v296, 0.0
      %v329 = vmax.f32 %v297, 0.0
      %v330 = vmax.f32 %v298, 0.0
      %v331 = vmax.f32 %v299, 0.0
      %v332 = vmax.f32 %v300, 0.0
      %v333 = vmax.f32 %v301, 0.0
      %v334 = vmax.f32 %v302, 0.0
      %v335 = vmax.f32 %v303, 0.0
      %v336 = vmax.f32 %v304, 0.0
      %v337 = vmax.f32 %v305, 0.0
      %v338 = vmax.f32 %v306, 0.0
      %v339 = vmax.f32 %v307, 0.0
      %v340 = vmax.f32 %v308, 0.0
      %v341 = vmax.f32 %v309, 0.0
      %v342 = vmax.f32 %v310, 0.0
      %v343 = vmax.f32 %v311, 0.0
      %v344 = vmax.f32 %v312, 0.0
      %v345 = vmax.f32 %v313, 0.0
      %v346 = vmax.f32 %v314, 0.0
      %v347 = vmax.f32 %v315, 0.0
      %v348 = vmax.f32 %v316, 0.0
      %v349 = vmax.f32 %v317, 0.0
      %v350 = vmax.f32 %v318, 0.0
      %v351 = vmax.f32 %v319, 0.0
      %v352 = vmax.f32 %v320, 0.0
      %v353 = vmax.f32 %v321, 0.0
      %v354 = vmax.f32 %v322, 0.0
      %v355 = vmax.f32 %v323, 0.0
      %v356 = vmax.f32 %v324, 0.0
      %357 = vst [vmem:[%s207] sm:$0xff] %v325
      %358 = vst [vmem:[%s207 + $0x8] sm:$0xff] %v326
      %359 = vst [vmem:[%s207 + $0x10] sm:$0xff] %v327
      %360 = vst [vmem:[%s207 + $0x18] sm:$0xff] %v328
      %361 = vst [vmem:[%s207 + $0x20] sm:$0xff] %v329
      %362 = vst [vmem:[%s207 + $0x28] sm:$0xff] %v330
      %363 = vst [vmem:[%s207 + $0x30] sm:$0xff] %v331
      %364 = vst [vmem:[%s207 + $0x38] sm:$0xff] %v332
      %365 = vst [vmem:[%s207 + $0x40] sm:$0xff] %v333
      %366 = vst [vmem:[%s207 + $0x48] sm:$0xff] %v334
      %367 = vst [vmem:[%s207 + $0x50] sm:$0xff] %v335
      %368 = vst [vmem:[%s207 + $0x58] sm:$0xff] %v336
      %369 = vst [vmem:[%s207 + $0x60] sm:$0xff] %v337
      %370 = vst [vmem:[%s207 + $0x68] sm:$0xff] %v338
      %371 = vst [vmem:[%s207 + $0x70] sm:$0xff] %v339
      %372 = vst [vmem:[%s207 + $0x78] sm:$0xff] %v340
      %373 = vst [vmem:[%s207 + $0x80] sm:$0xff] %v341
      %374 = vst [vmem:[%s207 + $0x88] sm:$0xff] %v342
      %375 = vst [vmem:[%s207 + $0x90] sm:$0xff] %v343
      %376 = vst [vmem:[%s207 + $0x98] sm:$0xff] %v344
      %377 = vst [vmem:[%s207 + $0xa0] sm:$0xff] %v345
      %378 = vst [vmem:[%s207 + $0xa8] sm:$0xff] %v346
      %379 = vst [vmem:[%s207 + $0xb0] sm:$0xff] %v347
      %380 = vst [vmem:[%s207 + $0xb8] sm:$0xff] %v348
      %381 = vst [vmem:[%s207 + $0xc0] sm:$0xff] %v349
      %382 = vst [vmem:[%s207 + $0xc8] sm:$0xff] %v350
      %383 = vst [vmem:[%s207 + $0xd0] sm:$0xff] %v351
      %384 = vst [vmem:[%s207 + $0xd8] sm:$0xff] %v352
      %385 = vst [vmem:[%s207 + $0xe0] sm:$0xff] %v353
      %386 = vst [vmem:[%s207 + $0xe8] sm:$0xff] %v354
      %387 = vst [vmem:[%s207 + $0xf0] sm:$0xff] %v355
      %388 = vst [vmem:[%s207 + $0xf8] sm:$0xff] %v356
      %v389 = vld [vmem:[%s201] ss:$2 sm:$0xff]
      %s390 = scalar_lea.vmem %s201, 16
      %v391 = vld [vmem:[%s390] ss:$2 sm:$0xff]
      %s392 = scalar_lea.vmem %s201, 32
      %v393 = vld [vmem:[%s392] ss:$2 sm:$0xff]
      %s394 = scalar_lea.vmem %s201, 48
      %v395 = vld [vmem:[%s394] ss:$2 sm:$0xff]
      %s396 = scalar_lea.vmem %s201, 64
      %v397 = vld [vmem:[%s396] ss:$2 sm:$0xff]
      %s398 = scalar_lea.vmem %s201, 80
      %v399 = vld [vmem:[%s398] ss:$2 sm:$0xff]
      %s400 = scalar_lea.vmem %s201, 96
      %v401 = vld [vmem:[%s400] ss:$2 sm:$0xff]
      %s402 = scalar_lea.vmem %s201, 112
      %v403 = vld [vmem:[%s402] ss:$2 sm:$0xff]
      %s404 = scalar_lea.vmem %s201, 128
      %v405 = vld [vmem:[%s404] ss:$2 sm:$0xff]
      %s406 = scalar_lea.vmem %s201, 144
      %v407 = vld [vmem:[%s406] ss:$2 sm:$0xff]
      %s408 = scalar_lea.vmem %s201, 160
      %v409 = vld [vmem:[%s408] ss:$2 sm:$0xff]
      %s410 = scalar_lea.vmem %s201, 176
      %v411 = vld [vmem:[%s410] ss:$2 sm:$0xff]
      %s412 = scalar_lea.vmem %s201, 192
      %v413 = vld [vmem:[%s412] ss:$2 sm:$0xff]
      %s414 = scalar_lea.vmem %s201, 208
      %v415 = vld [vmem:[%s414] ss:$2 sm:$0xff]
      %s416 = scalar_lea.vmem %s201, 224
      %v417 = vld [vmem:[%s416] ss:$2 sm:$0xff]
      %s418 = scalar_lea.vmem %s201, 240
      %v419 = vld [vmem:[%s418] ss:$2 sm:$0xff]
      %v420 = vmul.f32 %v389, %v253
      %v421 = vmul.f32 %v391, %v253
      %v422 = vmul.f32 %v393, %v253
      %v423 = vmul.f32 %v395, %v253
      %v424 = vmul.f32 %v397, %v253
      %v425 = vmul.f32 %v399, %v253
      %v426 = vmul.f32 %v401, %v253
      %v427 = vmul.f32 %v403, %v253
      %v428 = vmul.f32 %v405, %v253
      %v429 = vmul.f32 %v407, %v253
      %v430 = vmul.f32 %v409, %v253
      %v431 = vmul.f32 %v411, %v253
      %v432 = vmul.f32 %v413, %v253
      %v433 = vmul.f32 %v415, %v253
      %v434 = vmul.f32 %v417, %v253
      %v435 = vmul.f32 %v419, %v253
      %v436 = vadd.f32 %v420, %v291
      %v437 = vadd.f32 %v421, %v291
      %v438 = vadd.f32 %v422, %v291
      %v439 = vadd.f32 %v423, %v291
      %v440 = vadd.f32 %v424, %v291
      %v441 = vadd.f32 %v425, %v291
      %v442 = vadd.f32 %v426, %v291
      %v443 = vadd.f32 %v427, %v291
      %v444 = vadd.f32 %v428, %v291
      %v445 = vadd.f32 %v429, %v291
      %v446 = vadd.f32 %v430, %v291
      %v447 = vadd.f32 %v431, %v291
      %v448 = vadd.f32 %v432, %v291
      %v449 = vadd.f32 %v433, %v291
      %v450 = vadd.f32 %v434, %v291
      %v451 = vadd.f32 %v435, %v291
      %v452 = vmax.f32 %v436, 0.0
      %v453 = vmax.f32 %v437, 0.0
      %v454 = vmax.f32 %v438, 0.0
      %v455 = vmax.f32 %v439, 0.0
      %v456 = vmax.f32 %v440, 0.0
      %v457 = vmax.f32 %v441, 0.0
      %v458 = vmax.f32 %v442, 0.0
      %v459 = vmax.f32 %v443, 0.0
      %v460 = vmax.f32 %v444, 0.0
      %v461 = vmax.f32 %v445, 0.0
      %v462 = vmax.f32 %v446, 0.0
      %v463 = vmax.f32 %v447, 0.0
      %v464 = vmax.f32 %v448, 0.0
      %v465 = vmax.f32 %v449, 0.0
      %v466 = vmax.f32 %v450, 0.0
      %v467 = vmax.f32 %v451, 0.0
      %s468 = scalar_lea.vmem %s201, 1
      %v469 = vld [vmem:[%s468] ss:$2 sm:$0xff]
      %s470 = scalar_lea.vmem %s201, 17
      %v471 = vld [vmem:[%s470] ss:$2 sm:$0xff]
      %s472 = scalar_lea.vmem %s201, 33
      %v473 = vld [vmem:[%s472] ss:$2 sm:$0xff]
      %s474 = scalar_lea.vmem %s201, 49
      %v475 = vld [vmem:[%s474] ss:$2 sm:$0xff]
      %s476 = scalar_lea.vmem %s201, 65
      %v477 = vld [vmem:[%s476] ss:$2 sm:$0xff]
      %s478 = scalar_lea.vmem %s201, 81
      %v479 = vld [vmem:[%s478] ss:$2 sm:$0xff]
      %s480 = scalar_lea.vmem %s201, 97
      %v481 = vld [vmem:[%s480] ss:$2 sm:$0xff]
      %s482 = scalar_lea.vmem %s201, 113
      %v483 = vld [vmem:[%s482] ss:$2 sm:$0xff]
      %s484 = scalar_lea.vmem %s201, 129
      %v485 = vld [vmem:[%s484] ss:$2 sm:$0xff]
      %s486 = scalar_lea.vmem %s201, 145
      %v487 = vld [vmem:[%s486] ss:$2 sm:$0xff]
      %s488 = scalar_lea.vmem %s201, 161
      %v489 = vld [vmem:[%s488] ss:$2 sm:$0xff]
      %s490 = scalar_lea.vmem %s201, 177
      %v491 = vld [vmem:[%s490] ss:$2 sm:$0xff]
      %s492 = scalar_lea.vmem %s201, 193
      %v493 = vld [vmem:[%s492] ss:$2 sm:$0xff]
      %s494 = scalar_lea.vmem %s201, 209
      %v495 = vld [vmem:[%s494] ss:$2 sm:$0xff]
      %s496 = scalar_lea.vmem %s201, 225
      %v497 = vld [vmem:[%s496] ss:$2 sm:$0xff]
      %s498 = scalar_lea.vmem %s201, 241
      %v499 = vld [vmem:[%s498] ss:$2 sm:$0xff]
      %v500 = vmul.f32 %v469, %v253
      %v501 = vmul.f32 %v471, %v253
      %v502 = vmul.f32 %v473, %v253
      %v503 = vmul.f32 %v475, %v253
      %v504 = vmul.f32 %v477, %v253
      %v505 = vmul.f32 %v479, %v253
      %v506 = vmul.f32 %v481, %v253
      %v507 = vmul.f32 %v483, %v253
      %v508 = vmul.f32 %v485, %v253
      %v509 = vmul.f32 %v487, %v253
      %v510 = vmul.f32 %v489, %v253
      %v511 = vmul.f32 %v491, %v253
      %v512 = vmul.f32 %v493, %v253
      %v513 = vmul.f32 %v495, %v253
      %v514 = vmul.f32 %v497, %v253
      %v515 = vmul.f32 %v499, %v253
      %v516 = vadd.f32 %v500, %v291
      %v517 = vadd.f32 %v501, %v291
      %v518 = vadd.f32 %v502, %v291
      %v519 = vadd.f32 %v503, %v291
      %v520 = vadd.f32 %v504, %v291
      %v521 = vadd.f32 %v505, %v291
      %v522 = vadd.f32 %v506, %v291
      %v523 = vadd.f32 %v507, %v291
      %v524 = vadd.f32 %v508, %v291
      %v525 = vadd.f32 %v509, %v291
      %v526 = vadd.f32 %v510, %v291
      %v527 = vadd.f32 %v511, %v291
      %v528 = vadd.f32 %v512, %v291
      %v529 = vadd.f32 %v513, %v291
      %v530 = vadd.f32 %v514, %v291
      %v531 = vadd.f32 %v515, %v291
      %v532 = vmax.f32 %v516, 0.0
      %v533 = vmax.f32 %v517, 0.0
      %v534 = vmax.f32 %v518, 0.0
      %v535 = vmax.f32 %v519, 0.0
      %v536 = vmax.f32 %v520, 0.0
      %v537 = vmax.f32 %v521, 0.0
      %v538 = vmax.f32 %v522, 0.0
      %v539 = vmax.f32 %v523, 0.0
      %v540 = vmax.f32 %v524, 0.0
      %v541 = vmax.f32 %v525, 0.0
      %v542 = vmax.f32 %v526, 0.0
      %v543 = vmax.f32 %v527, 0.0
      %v544 = vmax.f32 %v528, 0.0
      %v545 = vmax.f32 %v529, 0.0
      %v546 = vmax.f32 %v530, 0.0
      %v547 = vmax.f32 %v531, 0.0
      %v548 = vmax.f32 %v452, %v532
      %v549 = vmax.f32 %v453, %v533
      %v550 = vmax.f32 %v454, %v534
      %v551 = vmax.f32 %v455, %v535
      %v552 = vmax.f32 %v456, %v536
      %v553 = vmax.f32 %v457, %v537
      %v554 = vmax.f32 %v458, %v538
      %v555 = vmax.f32 %v459, %v539
      %v556 = vmax.f32 %v460, %v540
      %v557 = vmax.f32 %v461, %v541
      %v558 = vmax.f32 %v462, %v542
      %v559 = vmax.f32 %v463, %v543
      %v560 = vmax.f32 %v464, %v544
      %v561 = vmax.f32 %v465, %v545
      %v562 = vmax.f32 %v466, %v546
      %v563 = vmax.f32 %v467, %v547
      %v564 = vmax.f32 %v548, %v549
      %v565 = vmax.f32 %v550, %v551
      %v566 = vmax.f32 %v552, %v553
      %v567 = vmax.f32 %v554, %v555
      %v568 = vmax.f32 %v556, %v557
      %v569 = vmax.f32 %v558, %v559
      %v570 = vmax.f32 %v560, %v561
      %v571 = vmax.f32 %v562, %v563
      %572 = vst [vmem:[%s213] sm:$0xff] %v564
      %573 = vst [vmem:[%s213 + $0x8] sm:$0xff] %v565
      %574 = vst [vmem:[%s213 + $0x10] sm:$0xff] %v566
      %575 = vst [vmem:[%s213 + $0x18] sm:$0xff] %v567
      %576 = vst [vmem:[%s213 + $0x20] sm:$0xff] %v568
      %577 = vst [vmem:[%s213 + $0x28] sm:$0xff] %v569
      %578 = vst [vmem:[%s213 + $0x30] sm:$0xff] %v570
      %579 = vst [vmem:[%s213 + $0x38] sm:$0xff] %v571
      %s580 = smul.u32 32, %s16
      %p581 = scmp.lt.s32.totalorder %s580, 63
      %s582 = scalar_select %p581, %s580, 63
      %s583 = smul.addr %s582, 8
      %s584 = scalar_lea.vmem %s3, %s583
      %s585 = smul.u32 8, %s16
      %p586 = scmp.lt.s32.totalorder %s585, 15
      %s587 = scalar_select %p586, %s585, 15
      %s588 = smul.addr %s587, 8
      %s589 = scalar_lea.vmem %s4, %s588
      // Predicated region
      $region33: #{encoder_block_forward.7} parent=31 // pred_check
        %p590 = pneg %p102
      $region34: #{encoder_block_forward.7} parent=31 // pred_check_branch
        %592 = sbr.rel (%p590) target = $region36
      $region35: #{encoder_block_forward.7} parent=31 // pred_region
        %s593 = smul.u32 32, %s16
      $region36: #{encoder_block_forward.7} parent=31 // pred_fallthru
        _
      // Predicated region
      $region37: #{encoder_block_forward.7} parent=31 // pred_check
        %p594 = pneg %p128
      $region38: #{encoder_block_forward.7} parent=31 // pred_check_branch
        %596 = sbr.rel (%p594) target = $region40
      $region39: #{encoder_block_forward.7} parent=31 // pred_region
        %s597 = smul.u32 8, %s16
      $region40: #{encoder_block_forward.7} parent=31 // pred_fallthru
        _
    $region32: #{encoder_block_forward.7} parent=5 // pred_fallthru
      _
    %p598 = scmp.le.s32.totalorder 2, %s11
    // Predicated region
    $region41: #{encoder_block_forward.7} parent=5 // pred_check
      %p599 = pneg %p598
    $region42: #{encoder_block_forward.7} parent=5 // pred_check_branch
      %601 = sbr.rel (%p599) target = $region44
    $region43: #{encoder_block_forward.7} parent=5 // pred_region
      %s602 = ssub.s32 %s11, 2
      // Predicated region
      $region45: #{encoder_block_forward.7} parent=43 // pred_check
        %p603 = pneg %p108
      $region46: #{encoder_block_forward.7} parent=43 // pred_check_branch
        %605 = sbr.rel (%p603) target = $region48
      $region47: #{encoder_block_forward.7} parent=43 // pred_region
        %s606 = smul.u32 32, %s17
        %p607 = scmp.lt.s32.totalorder %s606, 63
        %s608 = scalar_select %p607, %s606, 63
        %s609 = smul.addr %s608, 8
        %s610 = scalar_lea.vmem %s3, %s609
      $region48: #{encoder_block_forward.7} parent=43 // pred_fallthru
        _
      // Predicated region
      $region49: #{encoder_block_forward.7} parent=43 // pred_check
        %p611 = pneg %p134
      $region50: #{encoder_block_forward.7} parent=43 // pred_check_branch
        %613 = sbr.rel (%p611) target = $region52
      $region51: #{encoder_block_forward.7} parent=43 // pred_region
        %s614 = smul.u32 8, %s17
        %p615 = scmp.lt.s32.totalorder %s614, 15
        %s616 = scalar_select %p615, %s614, 15
        %s617 = smul.addr %s616, 8
        %s618 = scalar_lea.vmem %s4, %s617
      $region52: #{encoder_block_forward.7} parent=43 // pred_fallthru
        _
    $region44: #{encoder_block_forward.7} parent=5 // pred_fallthru
      _
  $region6: #{encoder_block_forward.7} parent=0 // loop_footer
    %s15 = sadd.s32 1, %s11
  $region7: #{encoder_block_forward.7} parent=0 // loop_footer_branch
    %10 = sbr.rel target = $region3
  $region8: #{encoder_block_forward.7} parent=0 // loop_exit
    _

</llo_original>
